<compile_context>
chip_gen: v5e
topology: v5e:2x2
jax: 0.10.0
libtpu: 0.0.40
codegen_flags: <defaults>
</compile_context>

<pallas_src>
import functools

import jax
import jax.numpy as jnp
from jax import lax
from jax.experimental import pallas as pl
from jax.experimental.pallas import tpu as pltpu

_SEQLEN_MULTIPLE = 128


def next_multiple(x: int, divisor: int) -> int:
    return ((x + divisor - 1) // divisor) * divisor


# ---------------------------------------------------------------------------
# Pallas kernel: fused head projection (bias folded into K) + cross-entropy
# nll + argmax.  Vocab lives on sublanes, rows on lanes; the vocab reduction is
# chunked with online-softmax accumulators to keep vreg pressure low.
# ---------------------------------------------------------------------------
def _head_ce_nll_argmax_kernel(tgt_ref, h_ref, w_ref, nll_ref, argmax_ref, *, chunk):
    tn = h_ref.shape[0]
    vpad = w_ref.shape[0]
    n_chunks = vpad // chunk

    h = h_ref[...]                                    # (tn, H+1) bf16, reused by all chunks
    tgt = tgt_ref[...]                                # (1, tn) int32 (rows on lanes)
    # Hoisted once: per-chunk row iota; absolute vocab id = base_iota + chunk offset.
    base_iota = lax.broadcasted_iota(jnp.int32, (chunk, tn), 0)
    sentinel = jnp.int32(chunk)                       # larger than any valid in-chunk index

    m_run = jnp.full((1, tn), -jnp.inf, jnp.float32)  # running max
    l_run = jnp.zeros((1, tn), jnp.float32)           # running sum of exp
    best = jnp.zeros((1, tn), jnp.int32)              # running argmax
    tgt_logit = jnp.zeros((1, tn), jnp.float32)       # gathered target-class logit

    # Static (unrolled) chunk loop: per-chunk temporaries are ~8 vregs each.
    for c in range(n_chunks):
        off = c * chunk
        # (chunk, H+1) x (tn, H+1)^T -> (chunk, tn) f32 on the MXU (bias = last K column).
        logits_c = lax.dot_general(
            w_ref[off:off + chunk, :], h,
            dimension_numbers=(((1,), (1,)), ((), ())),
            preferred_element_type=jnp.float32)

        # --- online log-sum-exp over the vocab (sublane) axis -----------------
        m_c = jnp.max(logits_c, axis=0, keepdims=True)          # (1, tn)
        m_new = jnp.maximum(m_run, m_c)
        shifted = logits_c - m_new                              # reused by softmax AND argmax
        l_run = l_run * jnp.exp(m_run - m_new) + jnp.sum(
            jnp.exp(shifted), axis=0, keepdims=True)

        # --- argmax (first occurrence): later chunks only win on strictly larger max
        cand = jnp.where(shifted >= 0.0, base_iota, sentinel)
        idx_c = jnp.min(cand, axis=0, keepdims=True)            # (1, tn)
        best = jnp.where(m_c > m_run, idx_c + off, best)

        # --- gather the logit of the target class (index relative to chunk) ---
        hit = base_iota == (tgt - off)                          # (chunk, tn)
        tgt_logit = tgt_logit + jnp.sum(
            jnp.where(hit, logits_c, 0.0), axis=0, keepdims=True)

        m_run = m_new

    nll_ref[...] = (m_run + jnp.log(l_run)) - tgt_logit
    argmax_ref[...] = best


def fused_head_ce_nll_argmax(h_flat, targets, w_head_aug_bf16):
    """h_flat: (N, H) activations (bf16 preferred), targets: (N,) int,
    w_head_aug_bf16: (Vpad, H+1) bf16 head with the bias folded as the last column.

    Returns per-row (nll, argmax_index), each shaped (N,)."""
    N, H = h_flat.shape
    Vpad, Haug = w_head_aug_bf16.shape
    assert Haug == H + 1
    assert N % 128 == 0

    # tn policy: 256-wide tiles for the v6e/v7x MXU, but keep >= 2 "parallel" grid
    # steps so v7x's two TensorCores both get work.
    tn = 256 if (N % 256 == 0 and N // 256 >= 2) else 128
    # Chunk size so one (chunk, tn) f32 temporary is ~8 vregs (32 KiB).
    chunk = max(8, 8192 // tn)
    assert Vpad % chunk == 0

    # Constant-1 column folds the head bias into the MXU pass (K = H+1).  For a real
    # model, emit this column from the model so the concat fuses with its last op.
    ones = jnp.ones((N, 1), jnp.bfloat16)
    h_aug = jnp.concatenate([h_flat.astype(jnp.bfloat16), ones], axis=-1)  # (N, H+1)
    tgt2d = targets.reshape(1, N).astype(jnp.int32)

    kernel = functools.partial(_head_ce_nll_argmax_kernel, chunk=chunk)

    nll, amax = pl.pallas_call(
        kernel,
        out_shape=(
            jax.ShapeDtypeStruct((1, N), jnp.float32),
            jax.ShapeDtypeStruct((1, N), jnp.int32),
        ),
        grid_spec=pltpu.PrefetchScalarGridSpec(
            num_scalar_prefetch=0,
            grid=(N // tn,),
            in_specs=[
                pl.BlockSpec((1, tn), lambda ni: (0, ni)),       # targets (lane-dense)
                pl.BlockSpec((tn, Haug), lambda ni: (ni, 0)),    # h row tile (no transpose)
                pl.BlockSpec((Vpad, Haug), lambda ni: (0, 0)),   # W (resident, DMA'd once)
            ],
            out_specs=[
                pl.BlockSpec((1, tn), lambda ni: (0, ni)),       # nll
                pl.BlockSpec((1, tn), lambda ni: (0, ni)),       # argmax
            ],
        ),
        compiler_params=pltpu.CompilerParams(
            dimension_semantics=("parallel",),                   # row tiles shard across TCs
            vmem_limit_bytes=32 * 1024 * 1024),
    )(tgt2d, h_aug, w_head_aug_bf16)

    return nll[0], amax[0]


# ---------------------------------------------------------------------------
# CategoricalFlowMatching (synthetic inner "model": embedding + kt-conditioned
# bias; head projection / CE / argmax runs in the Pallas kernel above).
# ---------------------------------------------------------------------------
class CategoricalFlowMatching:
    def __init__(self, vocab_size=500, eos_idx=499, hidden=32, param_key=None):
        self.vocab_size = vocab_size
        self.vocab_size_pad128 = next_multiple(vocab_size, 128)
        self.eos_idx = eos_idx
        self.hidden = hidden
        if param_key is None:
            param_key = jax.random.PRNGKey(42)
        ke, kt_, kw, kb = jax.random.split(param_key, 4)
        H, Vp = hidden, self.vocab_size_pad128

        # Head stored in PyTorch nn.Linear layout (out_features=Vpad, in_features=H).
        w_out = jax.random.normal(kw, (Vp, H), jnp.float32) * 0.02
        b_out = jax.random.normal(kb, (Vp,), jnp.float32) * 0.02
        # Suppress the 128-padding classes (zero weights, -1e30 bias) so they never
        # contribute to the log-sum-exp and never win the argmax.
        valid = jnp.arange(Vp) < vocab_size
        w_out = jnp.where(valid[:, None], w_out, 0.0)
        b_out = jnp.where(valid, b_out, jnp.float32(-1e30))

        self.params = {
            "emb":   jax.random.normal(ke, (vocab_size, H), jnp.float32) * 0.02,
            "w_t":   jax.random.normal(kt_, (H,), jnp.float32) * 0.02,
            "b_t":   jnp.zeros((H,), jnp.float32),
            "w_out": w_out,
            "b_out": b_out,
        }
        # Cached bf16 head with bias folded as an extra K column (kernel operand).
        # NOTE: must be rebuilt (and padded-row suppression re-applied) after any
        # update to w_out / b_out.
        self._w_head_aug_bf16 = jnp.concatenate(
            [w_out, b_out[:, None]], axis=1).astype(jnp.bfloat16)

        self._forward_jit = jax.jit(self._forward_impl)

    @staticmethod
    def kt(t):
        return 2.0 * t ** 2

    def _model(self, xt, kt):
        # TODO(synk): stand-in for the injected transformer `self.model`
        # (embedding + kt conditioning); emits bf16 activations so the head kernel
        # gets bf16 MXU operands with no extra cast/relayout pass.
        p = self.params
        h = p["emb"][xt]                                   # (B, T, H) gather
        h = h + kt[:, :, None] * p["w_t"][None, None, :] + p["b_t"][None, None, :]
        return h.astype(jnp.bfloat16)

    def _forward_impl(self, x1, key, w_head_aug_bf16):
        B, T = x1.shape
        k_t, k_x0, k_mask = jax.random.split(key, 3)

        t = jax.random.uniform(k_t, (B, 1), dtype=jnp.float32)
        kt = self.kt(t)                                    # (B, 1)
        x0 = jax.random.randint(k_x0, (B, T), 0, self.vocab_size, dtype=x1.dtype)
        mask_use_x0 = jax.random.uniform(k_mask, (B, T)) > kt
        xt = jnp.where(mask_use_x0, x0, x1)

        h = self._model(xt, kt)                            # (B, T, H) bf16
        N = B * T
        h_flat = h.reshape(N, self.hidden)
        x1_flat = x1.reshape(N).astype(jnp.int32)

        nll, preds = fused_head_ce_nll_argmax(h_flat, x1_flat, w_head_aug_bf16)

        # Matches the PyTorch reference: padded (eos-filled) positions are part of
        # the mean CE and of the eos-accuracy denominator.
        loss = jnp.mean(nll)

        mask_eos = (x1_flat == self.eos_idx).astype(jnp.float32)
        correct = (preds == x1_flat).astype(jnp.float32)
        # NOTE: like the PyTorch reference, divides by the eos count -> nan if the
        # (padded) batch contains no eos token; kept for semantic parity.
        accuracy = jnp.sum(correct * mask_eos / jnp.sum(mask_eos))
        perplexity = jnp.exp(loss)
        return loss, accuracy, perplexity

    def forward(self, x1, key):
        T = x1.shape[-1]
        if T % _SEQLEN_MULTIPLE != 0:
            T_padded = next_multiple(T, _SEQLEN_MULTIPLE)
            x1 = jnp.pad(x1, ((0, 0), (0, T_padded - T)),
                         constant_values=self.eos_idx)
        return self._forward_jit(x1, key, self._w_head_aug_bf16)


if __name__ == "__main__":
    key = jax.random.PRNGKey(0)
    k_data, k_noise, k_params = jax.random.split(key, 3)

    B, T = 2, 100                     # T pads to 128 inside forward()
    vocab_size, eos_idx, hidden = 500, 499, 32

    module = CategoricalFlowMatching(vocab_size=vocab_size, eos_idx=eos_idx,
                                     hidden=hidden, param_key=k_params)
    x1 = jax.random.randint(k_data, (B, T), 0, vocab_size, dtype=jnp.int32)

    # --- kernel-level numeric self-check against a pure-JAX reference ---------
    Np = 2 * 128
    k_h, k_tgt = jax.random.split(jax.random.PRNGKey(1))
    h_chk = (jax.random.normal(k_h, (Np, hidden), jnp.float32) * 0.05).astype(jnp.bfloat16)
    tgt_chk = jax.random.randint(k_tgt, (Np,), 0, vocab_size, dtype=jnp.int32)
    nll_k, pred_k = fused_head_ce_nll_argmax(h_chk, tgt_chk, module._w_head_aug_bf16)

    w_f32 = module._w_head_aug_bf16.astype(jnp.float32)           # (Vpad, H+1)
    h_aug_ref = jnp.concatenate(
        [h_chk.astype(jnp.float32), jnp.ones((Np, 1), jnp.float32)], axis=-1)
    logits_ref = h_aug_ref @ w_f32.T                              # (Np, Vpad)
    lse_ref = jax.scipy.special.logsumexp(logits_ref, axis=-1)
    tgt_logit_ref = jnp.take_along_axis(logits_ref, tgt_chk[:, None], axis=-1)[:, 0]
    nll_ref = lse_ref - tgt_logit_ref
    pred_ref = jnp.argmax(logits_ref, axis=-1).astype(jnp.int32)

    assert jnp.allclose(nll_k, nll_ref, atol=2e-2, rtol=2e-2), "nll mismatch vs reference"
    assert bool(jnp.all(pred_k == pred_ref)), "argmax mismatch vs reference"

    # --- full forward pass -----------------------------------------------------
    loss, accuracy, perplexity = module.forward(x1, k_noise)
    jax.block_until_ready((loss, accuracy, perplexity))

    assert loss.shape == () and accuracy.shape == () and perplexity.shape == ()
    assert bool(jnp.isfinite(loss)) and bool(jnp.isfinite(perplexity))
    print("KERNEL_OK")
</pallas_src>

<mosaic_0001>
module attributes {stable_mosaic.version = 11 : i64} {
  func.func @_head_ce_nll_argmax_kernel(%arg0: i32, %arg1: memref<1x128xi32, #tpu.memory_space<vmem>>, %arg2: memref<128x33xbf16, #tpu.memory_space<vmem>>, %arg3: memref<512x33xbf16, #tpu.memory_space<vmem>>, %arg4: memref<1x128xf32, #tpu.memory_space<vmem>>, %arg5: memref<1x128xi32, #tpu.memory_space<vmem>>) attributes {dimension_semantics = [#tpu.dimension_semantics<parallel>], iteration_bounds = array<i64: 2>, scalar_prefetch = 0 : i64, scratch_operands = 0 : i64, tpu.core_type = #tpu.core_type<tc>, window_params = [{transform_indices = @transform_0, window_bounds = array<i64: 1, 128>}, {transform_indices = @transform_1, window_bounds = array<i64: 128, 33>}, {pipeline_mode = #tpu.pipeline_mode<synchronous>, transform_indices = @transform_2, window_bounds = array<i64: 512, 33>}, {transform_indices = @transform_3, window_bounds = array<i64: 1, 128>}, {transform_indices = @transform_4, window_bounds = array<i64: 1, 128>}]} {
    %c0 = arith.constant 0 : index
    %c0_0 = arith.constant 0 : index
    %0 = vector.load %arg2[%c0, %c0_0] : memref<128x33xbf16, #tpu.memory_space<vmem>>, vector<128x33xbf16>
    %c0_1 = arith.constant 0 : index
    %c0_2 = arith.constant 0 : index
    %1 = vector.load %arg1[%c0_1, %c0_2] : memref<1x128xi32, #tpu.memory_space<vmem>>, vector<1x128xi32>
    %2 = tpu.iota {dimensions = array<i32: 0>} : vector<64x128xi32>
    %cst = arith.constant 0xFF800000 : f32
    %3 = vector.broadcast %cst : f32 to vector<1x128xf32>
    %cst_3 = arith.constant 0.000000e+00 : f32
    %4 = vector.broadcast %cst_3 : f32 to vector<1x128xf32>
    %c0_i32 = arith.constant 0 : i32
    %5 = vector.broadcast %c0_i32 : i32 to vector<1x128xi32>
    %cst_4 = arith.constant 0.000000e+00 : f32
    %6 = vector.broadcast %cst_4 : f32 to vector<1x128xf32>
    %c0_5 = arith.constant 0 : index
    %c0_6 = arith.constant 0 : index
    %7 = vector.load %arg3[%c0_5, %c0_6] : memref<512x33xbf16, #tpu.memory_space<vmem>>, vector<64x33xbf16>
    %cst_7 = arith.constant dense<0.000000e+00> : vector<64x128xf32>
    %8 = tpu.matmul %7, %0, %cst_7 {dimension_numbers = #tpu.dot_dimension_numbers<[1], [1], [0], [0], [0, 0, 1, 0], [], []>} : vector<64x33xbf16>, vector<128x33xbf16>, vector<64x128xf32> -> vector<64x128xf32>
    %cst_8 = arith.constant dense<0xFF800000> : vector<128xf32>
    %9 = vector.multi_reduction <maximumf>, %8, %cst_8 [0] : vector<64x128xf32> to vector<128xf32>
    %10 = vector.shape_cast %9 : vector<128xf32> to vector<1x128xf32>
    %11 = arith.maximumf %3, %10 : vector<1x128xf32>
    %12 = vector.broadcast %11 : vector<1x128xf32> to vector<64x128xf32>
    %13 = arith.subf %8, %12 : vector<64x128xf32>
    %14 = arith.subf %3, %11 : vector<1x128xf32>
    %15 = math.exp %14 : vector<1x128xf32>
    %16 = arith.mulf %4, %15 : vector<1x128xf32>
    %17 = math.exp %13 : vector<64x128xf32>
    %cst_9 = arith.constant dense<0.000000e+00> : vector<128xf32>
    %18 = vector.multi_reduction <add>, %17, %cst_9 [0] : vector<64x128xf32> to vector<128xf32>
    %19 = vector.shape_cast %18 : vector<128xf32> to vector<1x128xf32>
    %20 = arith.addf %16, %19 : vector<1x128xf32>
    %cst_10 = arith.constant 0.000000e+00 : f32
    %21 = vector.broadcast %cst_10 : f32 to vector<64x128xf32>
    %22 = arith.cmpf oge, %13, %21 : vector<64x128xf32>
    %c64_i32 = arith.constant 64 : i32
    %23 = vector.broadcast %c64_i32 : i32 to vector<64x128xi32>
    %24 = arith.select %22, %2, %23 : vector<64x128xi1>, vector<64x128xi32>
    %cst_11 = arith.constant dense<2147483647> : vector<128xi32>
    %25 = vector.multi_reduction <minsi>, %24, %cst_11 [0] : vector<64x128xi32> to vector<128xi32>
    %26 = vector.shape_cast %25 : vector<128xi32> to vector<1x128xi32>
    %27 = arith.cmpf ogt, %10, %3 : vector<1x128xf32>
    %c0_i32_12 = arith.constant 0 : i32
    %28 = vector.broadcast %c0_i32_12 : i32 to vector<1x128xi32>
    %29 = arith.addi %26, %28 : vector<1x128xi32>
    %30 = arith.select %27, %29, %5 : vector<1x128xi1>, vector<1x128xi32>
    %c0_i32_13 = arith.constant 0 : i32
    %31 = vector.broadcast %c0_i32_13 : i32 to vector<1x128xi32>
    %32 = arith.subi %1, %31 : vector<1x128xi32>
    %33 = vector.broadcast %32 : vector<1x128xi32> to vector<64x128xi32>
    %34 = arith.cmpi eq, %2, %33 : vector<64x128xi32>
    %cst_14 = arith.constant 0.000000e+00 : f32
    %35 = vector.broadcast %cst_14 : f32 to vector<64x128xf32>
    %36 = arith.select %34, %8, %35 : vector<64x128xi1>, vector<64x128xf32>
    %cst_15 = arith.constant dense<0.000000e+00> : vector<128xf32>
    %37 = vector.multi_reduction <add>, %36, %cst_15 [0] : vector<64x128xf32> to vector<128xf32>
    %38 = vector.shape_cast %37 : vector<128xf32> to vector<1x128xf32>
    %39 = arith.addf %6, %38 : vector<1x128xf32>
    %c64 = arith.constant 64 : index
    %c0_16 = arith.constant 0 : index
    %40 = vector.load %arg3[%c64, %c0_16] : memref<512x33xbf16, #tpu.memory_space<vmem>>, vector<64x33xbf16>
    %cst_17 = arith.constant dense<0.000000e+00> : vector<64x128xf32>
    %41 = tpu.matmul %40, %0, %cst_17 {dimension_numbers = #tpu.dot_dimension_numbers<[1], [1], [0], [0], [0, 0, 1, 0], [], []>} : vector<64x33xbf16>, vector<128x33xbf16>, vector<64x128xf32> -> vector<64x128xf32>
    %cst_18 = arith.constant dense<0xFF800000> : vector<128xf32>
    %42 = vector.multi_reduction <maximumf>, %41, %cst_18 [0] : vector<64x128xf32> to vector<128xf32>
    %43 = vector.shape_cast %42 : vector<128xf32> to vector<1x128xf32>
    %44 = arith.maximumf %11, %43 : vector<1x128xf32>
    %45 = vector.broadcast %44 : vector<1x128xf32> to vector<64x128xf32>
    %46 = arith.subf %41, %45 : vector<64x128xf32>
    %47 = arith.subf %11, %44 : vector<1x128xf32>
    %48 = math.exp %47 : vector<1x128xf32>
    %49 = arith.mulf %20, %48 : vector<1x128xf32>
    %50 = math.exp %46 : vector<64x128xf32>
    %cst_19 = arith.constant dense<0.000000e+00> : vector<128xf32>
    %51 = vector.multi_reduction <add>, %50, %cst_19 [0] : vector<64x128xf32> to vector<128xf32>
    %52 = vector.shape_cast %51 : vector<128xf32> to vector<1x128xf32>
    %53 = arith.addf %49, %52 : vector<1x128xf32>
    %cst_20 = arith.constant 0.000000e+00 : f32
    %54 = vector.broadcast %cst_20 : f32 to vector<64x128xf32>
    %55 = arith.cmpf oge, %46, %54 : vector<64x128xf32>
    %c64_i32_21 = arith.constant 64 : i32
    %56 = vector.broadcast %c64_i32_21 : i32 to vector<64x128xi32>
    %57 = arith.select %55, %2, %56 : vector<64x128xi1>, vector<64x128xi32>
    %cst_22 = arith.constant dense<2147483647> : vector<128xi32>
    %58 = vector.multi_reduction <minsi>, %57, %cst_22 [0] : vector<64x128xi32> to vector<128xi32>
    %59 = vector.shape_cast %58 : vector<128xi32> to vector<1x128xi32>
    %60 = arith.cmpf ogt, %43, %11 : vector<1x128xf32>
    %c64_i32_23 = arith.constant 64 : i32
    %61 = vector.broadcast %c64_i32_23 : i32 to vector<1x128xi32>
    %62 = arith.addi %59, %61 : vector<1x128xi32>
    %63 = arith.select %60, %62, %30 : vector<1x128xi1>, vector<1x128xi32>
    %c64_i32_24 = arith.constant 64 : i32
    %64 = vector.broadcast %c64_i32_24 : i32 to vector<1x128xi32>
    %65 = arith.subi %1, %64 : vector<1x128xi32>
    %66 = vector.broadcast %65 : vector<1x128xi32> to vector<64x128xi32>
    %67 = arith.cmpi eq, %2, %66 : vector<64x128xi32>
    %cst_25 = arith.constant 0.000000e+00 : f32
    %68 = vector.broadcast %cst_25 : f32 to vector<64x128xf32>
    %69 = arith.select %67, %41, %68 : vector<64x128xi1>, vector<64x128xf32>
    %cst_26 = arith.constant dense<0.000000e+00> : vector<128xf32>
    %70 = vector.multi_reduction <add>, %69, %cst_26 [0] : vector<64x128xf32> to vector<128xf32>
    %71 = vector.shape_cast %70 : vector<128xf32> to vector<1x128xf32>
    %72 = arith.addf %39, %71 : vector<1x128xf32>
    %c128 = arith.constant 128 : index
    %c0_27 = arith.constant 0 : index
    %73 = vector.load %arg3[%c128, %c0_27] : memref<512x33xbf16, #tpu.memory_space<vmem>>, vector<64x33xbf16>
    %cst_28 = arith.constant dense<0.000000e+00> : vector<64x128xf32>
    %74 = tpu.matmul %73, %0, %cst_28 {dimension_numbers = #tpu.dot_dimension_numbers<[1], [1], [0], [0], [0, 0, 1, 0], [], []>} : vector<64x33xbf16>, vector<128x33xbf16>, vector<64x128xf32> -> vector<64x128xf32>
    %cst_29 = arith.constant dense<0xFF800000> : vector<128xf32>
    %75 = vector.multi_reduction <maximumf>, %74, %cst_29 [0] : vector<64x128xf32> to vector<128xf32>
    %76 = vector.shape_cast %75 : vector<128xf32> to vector<1x128xf32>
    %77 = arith.maximumf %44, %76 : vector<1x128xf32>
    %78 = vector.broadcast %77 : vector<1x128xf32> to vector<64x128xf32>
    %79 = arith.subf %74, %78 : vector<64x128xf32>
    %80 = arith.subf %44, %77 : vector<1x128xf32>
    %81 = math.exp %80 : vector<1x128xf32>
    %82 = arith.mulf %53, %81 : vector<1x128xf32>
    %83 = math.exp %79 : vector<64x128xf32>
    %cst_30 = arith.constant dense<0.000000e+00> : vector<128xf32>
    %84 = vector.multi_reduction <add>, %83, %cst_30 [0] : vector<64x128xf32> to vector<128xf32>
    %85 = vector.shape_cast %84 : vector<128xf32> to vector<1x128xf32>
    %86 = arith.addf %82, %85 : vector<1x128xf32>
    %cst_31 = arith.constant 0.000000e+00 : f32
    %87 = vector.broadcast %cst_31 : f32 to vector<64x128xf32>
    %88 = arith.cmpf oge, %79, %87 : vector<64x128xf32>
    %c64_i32_32 = arith.constant 64 : i32
    %89 = vector.broadcast %c64_i32_32 : i32 to vector<64x128xi32>
    %90 = arith.select %88, %2, %89 : vector<64x128xi1>, vector<64x128xi32>
    %cst_33 = arith.constant dense<2147483647> : vector<128xi32>
    %91 = vector.multi_reduction <minsi>, %90, %cst_33 [0] : vector<64x128xi32> to vector<128xi32>
    %92 = vector.shape_cast %91 : vector<128xi32> to vector<1x128xi32>
    %93 = arith.cmpf ogt, %76, %44 : vector<1x128xf32>
    %c128_i32 = arith.constant 128 : i32
    %94 = vector.broadcast %c128_i32 : i32 to vector<1x128xi32>
    %95 = arith.addi %92, %94 : vector<1x128xi32>
    %96 = arith.select %93, %95, %63 : vector<1x128xi1>, vector<1x128xi32>
    %c128_i32_34 = arith.constant 128 : i32
    %97 = vector.broadcast %c128_i32_34 : i32 to vector<1x128xi32>
    %98 = arith.subi %1, %97 : vector<1x128xi32>
    %99 = vector.broadcast %98 : vector<1x128xi32> to vector<64x128xi32>
    %100 = arith.cmpi eq, %2, %99 : vector<64x128xi32>
    %cst_35 = arith.constant 0.000000e+00 : f32
    %101 = vector.broadcast %cst_35 : f32 to vector<64x128xf32>
    %102 = arith.select %100, %74, %101 : vector<64x128xi1>, vector<64x128xf32>
    %cst_36 = arith.constant dense<0.000000e+00> : vector<128xf32>
    %103 = vector.multi_reduction <add>, %102, %cst_36 [0] : vector<64x128xf32> to vector<128xf32>
    %104 = vector.shape_cast %103 : vector<128xf32> to vector<1x128xf32>
    %105 = arith.addf %72, %104 : vector<1x128xf32>
    %c192 = arith.constant 192 : index
    %c0_37 = arith.constant 0 : index
    %106 = vector.load %arg3[%c192, %c0_37] : memref<512x33xbf16, #tpu.memory_space<vmem>>, vector<64x33xbf16>
    %cst_38 = arith.constant dense<0.000000e+00> : vector<64x128xf32>
    %107 = tpu.matmul %106, %0, %cst_38 {dimension_numbers = #tpu.dot_dimension_numbers<[1], [1], [0], [0], [0, 0, 1, 0], [], []>} : vector<64x33xbf16>, vector<128x33xbf16>, vector<64x128xf32> -> vector<64x128xf32>
    %cst_39 = arith.constant dense<0xFF800000> : vector<128xf32>
    %108 = vector.multi_reduction <maximumf>, %107, %cst_39 [0] : vector<64x128xf32> to vector<128xf32>
    %109 = vector.shape_cast %108 : vector<128xf32> to vector<1x128xf32>
    %110 = arith.maximumf %77, %109 : vector<1x128xf32>
    %111 = vector.broadcast %110 : vector<1x128xf32> to vector<64x128xf32>
    %112 = arith.subf %107, %111 : vector<64x128xf32>
    %113 = arith.subf %77, %110 : vector<1x128xf32>
    %114 = math.exp %113 : vector<1x128xf32>
    %115 = arith.mulf %86, %114 : vector<1x128xf32>
    %116 = math.exp %112 : vector<64x128xf32>
    %cst_40 = arith.constant dense<0.000000e+00> : vector<128xf32>
    %117 = vector.multi_reduction <add>, %116, %cst_40 [0] : vector<64x128xf32> to vector<128xf32>
    %118 = vector.shape_cast %117 : vector<128xf32> to vector<1x128xf32>
    %119 = arith.addf %115, %118 : vector<1x128xf32>
    %cst_41 = arith.constant 0.000000e+00 : f32
    %120 = vector.broadcast %cst_41 : f32 to vector<64x128xf32>
    %121 = arith.cmpf oge, %112, %120 : vector<64x128xf32>
    %c64_i32_42 = arith.constant 64 : i32
    %122 = vector.broadcast %c64_i32_42 : i32 to vector<64x128xi32>
    %123 = arith.select %121, %2, %122 : vector<64x128xi1>, vector<64x128xi32>
    %cst_43 = arith.constant dense<2147483647> : vector<128xi32>
    %124 = vector.multi_reduction <minsi>, %123, %cst_43 [0] : vector<64x128xi32> to vector<128xi32>
    %125 = vector.shape_cast %124 : vector<128xi32> to vector<1x128xi32>
    %126 = arith.cmpf ogt, %109, %77 : vector<1x128xf32>
    %c192_i32 = arith.constant 192 : i32
    %127 = vector.broadcast %c192_i32 : i32 to vector<1x128xi32>
    %128 = arith.addi %125, %127 : vector<1x128xi32>
    %129 = arith.select %126, %128, %96 : vector<1x128xi1>, vector<1x128xi32>
    %c192_i32_44 = arith.constant 192 : i32
    %130 = vector.broadcast %c192_i32_44 : i32 to vector<1x128xi32>
    %131 = arith.subi %1, %130 : vector<1x128xi32>
    %132 = vector.broadcast %131 : vector<1x128xi32> to vector<64x128xi32>
    %133 = arith.cmpi eq, %2, %132 : vector<64x128xi32>
    %cst_45 = arith.constant 0.000000e+00 : f32
    %134 = vector.broadcast %cst_45 : f32 to vector<64x128xf32>
    %135 = arith.select %133, %107, %134 : vector<64x128xi1>, vector<64x128xf32>
    %cst_46 = arith.constant dense<0.000000e+00> : vector<128xf32>
    %136 = vector.multi_reduction <add>, %135, %cst_46 [0] : vector<64x128xf32> to vector<128xf32>
    %137 = vector.shape_cast %136 : vector<128xf32> to vector<1x128xf32>
    %138 = arith.addf %105, %137 : vector<1x128xf32>
    %c256 = arith.constant 256 : index
    %c0_47 = arith.constant 0 : index
    %139 = vector.load %arg3[%c256, %c0_47] : memref<512x33xbf16, #tpu.memory_space<vmem>>, vector<64x33xbf16>
    %cst_48 = arith.constant dense<0.000000e+00> : vector<64x128xf32>
    %140 = tpu.matmul %139, %0, %cst_48 {dimension_numbers = #tpu.dot_dimension_numbers<[1], [1], [0], [0], [0, 0, 1, 0], [], []>} : vector<64x33xbf16>, vector<128x33xbf16>, vector<64x128xf32> -> vector<64x128xf32>
    %cst_49 = arith.constant dense<0xFF800000> : vector<128xf32>
    %141 = vector.multi_reduction <maximumf>, %140, %cst_49 [0] : vector<64x128xf32> to vector<128xf32>
    %142 = vector.shape_cast %141 : vector<128xf32> to vector<1x128xf32>
    %143 = arith.maximumf %110, %142 : vector<1x128xf32>
    %144 = vector.broadcast %143 : vector<1x128xf32> to vector<64x128xf32>
    %145 = arith.subf %140, %144 : vector<64x128xf32>
    %146 = arith.subf %110, %143 : vector<1x128xf32>
    %147 = math.exp %146 : vector<1x128xf32>
    %148 = arith.mulf %119, %147 : vector<1x128xf32>
    %149 = math.exp %145 : vector<64x128xf32>
    %cst_50 = arith.constant dense<0.000000e+00> : vector<128xf32>
    %150 = vector.multi_reduction <add>, %149, %cst_50 [0] : vector<64x128xf32> to vector<128xf32>
    %151 = vector.shape_cast %150 : vector<128xf32> to vector<1x128xf32>
    %152 = arith.addf %148, %151 : vector<1x128xf32>
    %cst_51 = arith.constant 0.000000e+00 : f32
    %153 = vector.broadcast %cst_51 : f32 to vector<64x128xf32>
    %154 = arith.cmpf oge, %145, %153 : vector<64x128xf32>
    %c64_i32_52 = arith.constant 64 : i32
    %155 = vector.broadcast %c64_i32_52 : i32 to vector<64x128xi32>
    %156 = arith.select %154, %2, %155 : vector<64x128xi1>, vector<64x128xi32>
    %cst_53 = arith.constant dense<2147483647> : vector<128xi32>
    %157 = vector.multi_reduction <minsi>, %156, %cst_53 [0] : vector<64x128xi32> to vector<128xi32>
    %158 = vector.shape_cast %157 : vector<128xi32> to vector<1x128xi32>
    %159 = arith.cmpf ogt, %142, %110 : vector<1x128xf32>
    %c256_i32 = arith.constant 256 : i32
    %160 = vector.broadcast %c256_i32 : i32 to vector<1x128xi32>
    %161 = arith.addi %158, %160 : vector<1x128xi32>
    %162 = arith.select %159, %161, %129 : vector<1x128xi1>, vector<1x128xi32>
    %c256_i32_54 = arith.constant 256 : i32
    %163 = vector.broadcast %c256_i32_54 : i32 to vector<1x128xi32>
    %164 = arith.subi %1, %163 : vector<1x128xi32>
    %165 = vector.broadcast %164 : vector<1x128xi32> to vector<64x128xi32>
    %166 = arith.cmpi eq, %2, %165 : vector<64x128xi32>
    %cst_55 = arith.constant 0.000000e+00 : f32
    %167 = vector.broadcast %cst_55 : f32 to vector<64x128xf32>
    %168 = arith.select %166, %140, %167 : vector<64x128xi1>, vector<64x128xf32>
    %cst_56 = arith.constant dense<0.000000e+00> : vector<128xf32>
    %169 = vector.multi_reduction <add>, %168, %cst_56 [0] : vector<64x128xf32> to vector<128xf32>
    %170 = vector.shape_cast %169 : vector<128xf32> to vector<1x128xf32>
    %171 = arith.addf %138, %170 : vector<1x128xf32>
    %c320 = arith.constant 320 : index
    %c0_57 = arith.constant 0 : index
    %172 = vector.load %arg3[%c320, %c0_57] : memref<512x33xbf16, #tpu.memory_space<vmem>>, vector<64x33xbf16>
    %cst_58 = arith.constant dense<0.000000e+00> : vector<64x128xf32>
    %173 = tpu.matmul %172, %0, %cst_58 {dimension_numbers = #tpu.dot_dimension_numbers<[1], [1], [0], [0], [0, 0, 1, 0], [], []>} : vector<64x33xbf16>, vector<128x33xbf16>, vector<64x128xf32> -> vector<64x128xf32>
    %cst_59 = arith.constant dense<0xFF800000> : vector<128xf32>
    %174 = vector.multi_reduction <maximumf>, %173, %cst_59 [0] : vector<64x128xf32> to vector<128xf32>
    %175 = vector.shape_cast %174 : vector<128xf32> to vector<1x128xf32>
    %176 = arith.maximumf %143, %175 : vector<1x128xf32>
    %177 = vector.broadcast %176 : vector<1x128xf32> to vector<64x128xf32>
    %178 = arith.subf %173, %177 : vector<64x128xf32>
    %179 = arith.subf %143, %176 : vector<1x128xf32>
    %180 = math.exp %179 : vector<1x128xf32>
    %181 = arith.mulf %152, %180 : vector<1x128xf32>
    %182 = math.exp %178 : vector<64x128xf32>
    %cst_60 = arith.constant dense<0.000000e+00> : vector<128xf32>
    %183 = vector.multi_reduction <add>, %182, %cst_60 [0] : vector<64x128xf32> to vector<128xf32>
    %184 = vector.shape_cast %183 : vector<128xf32> to vector<1x128xf32>
    %185 = arith.addf %181, %184 : vector<1x128xf32>
    %cst_61 = arith.constant 0.000000e+00 : f32
    %186 = vector.broadcast %cst_61 : f32 to vector<64x128xf32>
    %187 = arith.cmpf oge, %178, %186 : vector<64x128xf32>
    %c64_i32_62 = arith.constant 64 : i32
    %188 = vector.broadcast %c64_i32_62 : i32 to vector<64x128xi32>
    %189 = arith.select %187, %2, %188 : vector<64x128xi1>, vector<64x128xi32>
    %cst_63 = arith.constant dense<2147483647> : vector<128xi32>
    %190 = vector.multi_reduction <minsi>, %189, %cst_63 [0] : vector<64x128xi32> to vector<128xi32>
    %191 = vector.shape_cast %190 : vector<128xi32> to vector<1x128xi32>
    %192 = arith.cmpf ogt, %175, %143 : vector<1x128xf32>
    %c320_i32 = arith.constant 320 : i32
    %193 = vector.broadcast %c320_i32 : i32 to vector<1x128xi32>
    %194 = arith.addi %191, %193 : vector<1x128xi32>
    %195 = arith.select %192, %194, %162 : vector<1x128xi1>, vector<1x128xi32>
    %c320_i32_64 = arith.constant 320 : i32
    %196 = vector.broadcast %c320_i32_64 : i32 to vector<1x128xi32>
    %197 = arith.subi %1, %196 : vector<1x128xi32>
    %198 = vector.broadcast %197 : vector<1x128xi32> to vector<64x128xi32>
    %199 = arith.cmpi eq, %2, %198 : vector<64x128xi32>
    %cst_65 = arith.constant 0.000000e+00 : f32
    %200 = vector.broadcast %cst_65 : f32 to vector<64x128xf32>
    %201 = arith.select %199, %173, %200 : vector<64x128xi1>, vector<64x128xf32>
    %cst_66 = arith.constant dense<0.000000e+00> : vector<128xf32>
    %202 = vector.multi_reduction <add>, %201, %cst_66 [0] : vector<64x128xf32> to vector<128xf32>
    %203 = vector.shape_cast %202 : vector<128xf32> to vector<1x128xf32>
    %204 = arith.addf %171, %203 : vector<1x128xf32>
    %c384 = arith.constant 384 : index
    %c0_67 = arith.constant 0 : index
    %205 = vector.load %arg3[%c384, %c0_67] : memref<512x33xbf16, #tpu.memory_space<vmem>>, vector<64x33xbf16>
    %cst_68 = arith.constant dense<0.000000e+00> : vector<64x128xf32>
    %206 = tpu.matmul %205, %0, %cst_68 {dimension_numbers = #tpu.dot_dimension_numbers<[1], [1], [0], [0], [0, 0, 1, 0], [], []>} : vector<64x33xbf16>, vector<128x33xbf16>, vector<64x128xf32> -> vector<64x128xf32>
    %cst_69 = arith.constant dense<0xFF800000> : vector<128xf32>
    %207 = vector.multi_reduction <maximumf>, %206, %cst_69 [0] : vector<64x128xf32> to vector<128xf32>
    %208 = vector.shape_cast %207 : vector<128xf32> to vector<1x128xf32>
    %209 = arith.maximumf %176, %208 : vector<1x128xf32>
    %210 = vector.broadcast %209 : vector<1x128xf32> to vector<64x128xf32>
    %211 = arith.subf %206, %210 : vector<64x128xf32>
    %212 = arith.subf %176, %209 : vector<1x128xf32>
    %213 = math.exp %212 : vector<1x128xf32>
    %214 = arith.mulf %185, %213 : vector<1x128xf32>
    %215 = math.exp %211 : vector<64x128xf32>
    %cst_70 = arith.constant dense<0.000000e+00> : vector<128xf32>
    %216 = vector.multi_reduction <add>, %215, %cst_70 [0] : vector<64x128xf32> to vector<128xf32>
    %217 = vector.shape_cast %216 : vector<128xf32> to vector<1x128xf32>
    %218 = arith.addf %214, %217 : vector<1x128xf32>
    %cst_71 = arith.constant 0.000000e+00 : f32
    %219 = vector.broadcast %cst_71 : f32 to vector<64x128xf32>
    %220 = arith.cmpf oge, %211, %219 : vector<64x128xf32>
    %c64_i32_72 = arith.constant 64 : i32
    %221 = vector.broadcast %c64_i32_72 : i32 to vector<64x128xi32>
    %222 = arith.select %220, %2, %221 : vector<64x128xi1>, vector<64x128xi32>
    %cst_73 = arith.constant dense<2147483647> : vector<128xi32>
    %223 = vector.multi_reduction <minsi>, %222, %cst_73 [0] : vector<64x128xi32> to vector<128xi32>
    %224 = vector.shape_cast %223 : vector<128xi32> to vector<1x128xi32>
    %225 = arith.cmpf ogt, %208, %176 : vector<1x128xf32>
    %c384_i32 = arith.constant 384 : i32
    %226 = vector.broadcast %c384_i32 : i32 to vector<1x128xi32>
    %227 = arith.addi %224, %226 : vector<1x128xi32>
    %228 = arith.select %225, %227, %195 : vector<1x128xi1>, vector<1x128xi32>
    %c384_i32_74 = arith.constant 384 : i32
    %229 = vector.broadcast %c384_i32_74 : i32 to vector<1x128xi32>
    %230 = arith.subi %1, %229 : vector<1x128xi32>
    %231 = vector.broadcast %230 : vector<1x128xi32> to vector<64x128xi32>
    %232 = arith.cmpi eq, %2, %231 : vector<64x128xi32>
    %cst_75 = arith.constant 0.000000e+00 : f32
    %233 = vector.broadcast %cst_75 : f32 to vector<64x128xf32>
    %234 = arith.select %232, %206, %233 : vector<64x128xi1>, vector<64x128xf32>
    %cst_76 = arith.constant dense<0.000000e+00> : vector<128xf32>
    %235 = vector.multi_reduction <add>, %234, %cst_76 [0] : vector<64x128xf32> to vector<128xf32>
    %236 = vector.shape_cast %235 : vector<128xf32> to vector<1x128xf32>
    %237 = arith.addf %204, %236 : vector<1x128xf32>
    %c448 = arith.constant 448 : index
    %c0_77 = arith.constant 0 : index
    %238 = vector.load %arg3[%c448, %c0_77] : memref<512x33xbf16, #tpu.memory_space<vmem>>, vector<64x33xbf16>
    %cst_78 = arith.constant dense<0.000000e+00> : vector<64x128xf32>
    %239 = tpu.matmul %238, %0, %cst_78 {dimension_numbers = #tpu.dot_dimension_numbers<[1], [1], [0], [0], [0, 0, 1, 0], [], []>} : vector<64x33xbf16>, vector<128x33xbf16>, vector<64x128xf32> -> vector<64x128xf32>
    %cst_79 = arith.constant dense<0xFF800000> : vector<128xf32>
    %240 = vector.multi_reduction <maximumf>, %239, %cst_79 [0] : vector<64x128xf32> to vector<128xf32>
    %241 = vector.shape_cast %240 : vector<128xf32> to vector<1x128xf32>
    %242 = arith.maximumf %209, %241 : vector<1x128xf32>
    %243 = vector.broadcast %242 : vector<1x128xf32> to vector<64x128xf32>
    %244 = arith.subf %239, %243 : vector<64x128xf32>
    %245 = arith.subf %209, %242 : vector<1x128xf32>
    %246 = math.exp %245 : vector<1x128xf32>
    %247 = arith.mulf %218, %246 : vector<1x128xf32>
    %248 = math.exp %244 : vector<64x128xf32>
    %cst_80 = arith.constant dense<0.000000e+00> : vector<128xf32>
    %249 = vector.multi_reduction <add>, %248, %cst_80 [0] : vector<64x128xf32> to vector<128xf32>
    %250 = vector.shape_cast %249 : vector<128xf32> to vector<1x128xf32>
    %251 = arith.addf %247, %250 : vector<1x128xf32>
    %cst_81 = arith.constant 0.000000e+00 : f32
    %252 = vector.broadcast %cst_81 : f32 to vector<64x128xf32>
    %253 = arith.cmpf oge, %244, %252 : vector<64x128xf32>
    %c64_i32_82 = arith.constant 64 : i32
    %254 = vector.broadcast %c64_i32_82 : i32 to vector<64x128xi32>
    %255 = arith.select %253, %2, %254 : vector<64x128xi1>, vector<64x128xi32>
    %cst_83 = arith.constant dense<2147483647> : vector<128xi32>
    %256 = vector.multi_reduction <minsi>, %255, %cst_83 [0] : vector<64x128xi32> to vector<128xi32>
    %257 = vector.shape_cast %256 : vector<128xi32> to vector<1x128xi32>
    %258 = arith.cmpf ogt, %241, %209 : vector<1x128xf32>
    %c448_i32 = arith.constant 448 : i32
    %259 = vector.broadcast %c448_i32 : i32 to vector<1x128xi32>
    %260 = arith.addi %257, %259 : vector<1x128xi32>
    %261 = arith.select %258, %260, %228 : vector<1x128xi1>, vector<1x128xi32>
    %c448_i32_84 = arith.constant 448 : i32
    %262 = vector.broadcast %c448_i32_84 : i32 to vector<1x128xi32>
    %263 = arith.subi %1, %262 : vector<1x128xi32>
    %264 = vector.broadcast %263 : vector<1x128xi32> to vector<64x128xi32>
    %265 = arith.cmpi eq, %2, %264 : vector<64x128xi32>
    %cst_85 = arith.constant 0.000000e+00 : f32
    %266 = vector.broadcast %cst_85 : f32 to vector<64x128xf32>
    %267 = arith.select %265, %239, %266 : vector<64x128xi1>, vector<64x128xf32>
    %cst_86 = arith.constant dense<0.000000e+00> : vector<128xf32>
    %268 = vector.multi_reduction <add>, %267, %cst_86 [0] : vector<64x128xf32> to vector<128xf32>
    %269 = vector.shape_cast %268 : vector<128xf32> to vector<1x128xf32>
    %270 = arith.addf %237, %269 : vector<1x128xf32>
    %271 = math.log %251 : vector<1x128xf32>
    %272 = arith.addf %242, %271 : vector<1x128xf32>
    %273 = arith.subf %272, %270 : vector<1x128xf32>
    %c0_87 = arith.constant 0 : index
    %c0_88 = arith.constant 0 : index
    %274 = vector.load %arg4[%c0_87, %c0_88] : memref<1x128xf32, #tpu.memory_space<vmem>>, vector<1x128xf32>
    tpu.vector_store %arg4[%c0_87, %c0_88], %273 {strides = array<i32>} : memref<1x128xf32, #tpu.memory_space<vmem>>, vector<1x128xf32>,
    %c0_89 = arith.constant 0 : index
    %c0_90 = arith.constant 0 : index
    %275 = vector.load %arg5[%c0_89, %c0_90] : memref<1x128xi32, #tpu.memory_space<vmem>>, vector<1x128xi32>
    tpu.vector_store %arg5[%c0_89, %c0_90], %261 {strides = array<i32>} : memref<1x128xi32, #tpu.memory_space<vmem>>, vector<1x128xi32>,
    return
  }
  func.func @transform_0(%arg0: i32) -> (i32, i32) {
    %c0_i32 = arith.constant 0 : i32
    %c0_i32_0 = arith.constant 0 : i32
    return %c0_i32, %arg0 : i32, i32
  }
  func.func @transform_1(%arg0: i32) -> (i32, i32) {
    %c0_i32 = arith.constant 0 : i32
    %c0_i32_0 = arith.constant 0 : i32
    return %arg0, %c0_i32 : i32, i32
  }
  func.func @transform_2(%arg0: i32) -> (i32, i32) {
    %c0_i32 = arith.constant 0 : i32
    %c0_i32_0 = arith.constant 0 : i32
    %c0_i32_1 = arith.constant 0 : i32
    return %c0_i32, %c0_i32_0 : i32, i32
  }
  func.func @transform_3(%arg0: i32) -> (i32, i32) {
    %c0_i32 = arith.constant 0 : i32
    %c0_i32_0 = arith.constant 0 : i32
    return %c0_i32, %arg0 : i32, i32
  }
  func.func @transform_4(%arg0: i32) -> (i32, i32) {
    %c0_i32 = arith.constant 0 : i32
    %c0_i32_0 = arith.constant 0 : i32
    return %c0_i32, %arg0 : i32, i32
  }
}

</mosaic_0001>

<llo_original>
// kernel: tpu_custom_call.1
$region0: #{tpu_custom_call.1}
  #allocation0 [shape = 'u32[]', space=smem, size = 0x4, offset = 0x4, fixed_abs, tag = 'smem constant byte address 0x4 - core index']
  #allocation1 [shape = 'u32[72,128]{1,0:T(1,128)}', space=vmem, size = 0x9000, scoped, tag = 'internal scratch']
  %s0 = inlined_call_operand.vmem [shape: s32[1,256], index: 0, kind: input, shape index: {}]
  %s1 = inlined_call_operand.vmem [shape: bf16[256,33], index: 1, kind: input, shape index: {}]
  %s2 = inlined_call_operand.vmem [shape: bf16[512,33], index: 2, kind: input, shape index: {}]
  %s3 = inlined_call_operand.hbm [shape: f32[1,256], index: 3, kind: output, shape index: {0}]
  %s4 = inlined_call_operand.hbm [shape: s32[1,256], index: 4, kind: output, shape index: {1}]
  %5 = xla_tuple %s3, %s4
  %s6 = sld [smem:[#allocation0]]
  $region53: #{tpu_custom_call.1} parent=0
    _
  %s8 = ssub.s32 1, %s6
  %s9 = scalar_select 0, %s8, %s6
  $region1: #{tpu_custom_call.1} parent=0
    #allocation2 [shape = 'u8[1024]{0}', space=vmem, size = 0x400, scoped, tag = 'output window, operand 0']
    #allocation3 [shape = 's32[2]{0}', space=sflag, size = 0x8, scoped, tag = 'scoped memory for tpu_custom_call.1']
    #allocation4 [shape = 'u8[1024]{0}', space=vmem, size = 0x400, scoped, tag = 'output window, operand 1']
    #allocation5 [shape = 's32[2]{0}', space=sflag, size = 0x8, scoped, tag = 'scoped memory for tpu_custom_call.1']
    %10 = vsyncpa [#allocation3], 0
    %s11 = scalar_lea.sflag [#allocation3], 1
    %12 = vsyncpa %s11, 0
    %13 = vsyncpa [#allocation5], 0
    %s14 = scalar_lea.sflag [#allocation5], 1
    %15 = vsyncpa %s14, 0
    loop: start=0, step=1, limit=4
    $region2: #{tpu_custom_call.1} parent=1 // loop_pre_header
      _
    $region3: #{tpu_custom_call.1} parent=1 // loop_header
      %s17 = sphi 0, %s21
      %p18 = scmp.ge.s32.totalorder %s17, 4
      %s27 = sphi 0, %s29
      %s30 = sphi 0, %s27
      %s31 = sphi 0, %s30
      %s47 = sphi 0, %s31
      %s53 = sphi 0, %s55
      %s56 = sphi 0, %s53
      %s57 = sphi 0, %s56
      %s73 = sphi 0, %s57
      %s77 = sphi 0, %s77
      %s79 = sphi 0, %s77
      %s80 = sphi 0, %s79
      %s94 = sphi 0, %s80
      %s100 = sphi 0, %s102
      %s103 = sphi 0, %s100
      %s104 = sphi 0, %s103
      %s120 = sphi 0, %s104
      %s126 = sphi 0, %s128
      %s129 = sphi 0, %s126
      %s130 = sphi 0, %s129
      %s146 = sphi 0, %s130
    $region4: #{tpu_custom_call.1} parent=1 // loop_header_branch
      %20 = sbr.rel (%p18) target = $region8
    $region5: #{tpu_custom_call.1} parent=1 // loop_body
      %s22 = ssub.s32 %s17, 1
      %s23 = ssub.s32 %s17, 2
      %s24 = sadd.s32 %s17, 1
      %s25 = ssub.s32 %s17, %s24
      %p26 = scmp.eq.s32.totalorder %s25, 0
      %s28 = sadd.s32 %s27, 1
      %s29 = scalar_select %p26, %s27, %s28
      %p32 = pneg %p26
      %p33 = scmp.eq.s32.totalorder %s17, 1
      %p34 = por %p32, %p33
      %p35 = scmp.ne.s32.totalorder %s27, %s30
      %p36 = scmp.eq.s32.totalorder %s17, 0
      %p37 = por %p35, %p36
      %p38 = scmp.ne.s32.totalorder %s27, %s30
      %p39 = scmp.eq.s32.totalorder %s22, 1
      %p40 = por %p38, %p39
      %p41 = scmp.ne.s32.totalorder %s30, %s31
      %p42 = scmp.eq.s32.totalorder %s22, 0
      %p43 = por %p41, %p42
      %p44 = scmp.ne.s32.totalorder %s30, %s31
      %p45 = scmp.eq.s32.totalorder %s23, 1
      %p46 = por %p44, %p45
      %p48 = scmp.ne.s32.totalorder %s31, %s47
      %p49 = scmp.eq.s32.totalorder %s23, 0
      %p50 = por %p48, %p49
      %s51 = ssub.s32 %s17, %s24
      %p52 = scmp.eq.s32.totalorder %s51, 0
      %s54 = sadd.s32 %s53, 1
      %s55 = scalar_select %p52, %s53, %s54
      %p58 = pneg %p52
      %p59 = scmp.eq.s32.totalorder %s17, 1
      %p60 = por %p58, %p59
      %p61 = scmp.ne.s32.totalorder %s53, %s56
      %p62 = scmp.eq.s32.totalorder %s17, 0
      %p63 = por %p61, %p62
      %p64 = scmp.ne.s32.totalorder %s53, %s56
      %p65 = scmp.eq.s32.totalorder %s22, 1
      %p66 = por %p64, %p65
      %p67 = scmp.ne.s32.totalorder %s56, %s57
      %p68 = scmp.eq.s32.totalorder %s22, 0
      %p69 = por %p67, %p68
      %p70 = scmp.ne.s32.totalorder %s56, %s57
      %p71 = scmp.eq.s32.totalorder %s23, 1
      %p72 = por %p70, %p71
      %p74 = scmp.ne.s32.totalorder %s57, %s73
      %p75 = scmp.eq.s32.totalorder %s23, 0
      %p76 = por %p74, %p75
      %s78 = sadd.s32 %s77, 1
      %p81 = scmp.eq.s32.totalorder %s17, 1
      %p82 = scmp.ne.s32.totalorder %s77, %s79
      %p83 = scmp.eq.s32.totalorder %s17, 0
      %p84 = por %p82, %p83
      %p85 = scmp.ne.s32.totalorder %s77, %s79
      %p86 = scmp.eq.s32.totalorder %s22, 1
      %p87 = por %p85, %p86
      %p88 = scmp.ne.s32.totalorder %s79, %s80
      %p89 = scmp.eq.s32.totalorder %s22, 0
      %p90 = por %p88, %p89
      %p91 = scmp.ne.s32.totalorder %s79, %s80
      %p92 = scmp.eq.s32.totalorder %s23, 1
      %p93 = por %p91, %p92
      %p95 = scmp.ne.s32.totalorder %s80, %s94
      %p96 = scmp.eq.s32.totalorder %s23, 0
      %p97 = por %p95, %p96
      %s98 = ssub.s32 %s17, %s24
      %p99 = scmp.eq.s32.totalorder %s98, 0
      %s101 = sadd.s32 %s100, 1
      %s102 = scalar_select %p99, %s100, %s101
      %p105 = pneg %p99
      %p106 = scmp.eq.s32.totalorder %s17, 1
      %p107 = por %p105, %p106
      %p108 = scmp.ne.s32.totalorder %s100, %s103
      %p109 = scmp.eq.s32.totalorder %s17, 0
      %p110 = por %p108, %p109
      %p111 = scmp.ne.s32.totalorder %s100, %s103
      %p112 = scmp.eq.s32.totalorder %s22, 1
      %p113 = por %p111, %p112
      %p114 = scmp.ne.s32.totalorder %s103, %s104
      %p115 = scmp.eq.s32.totalorder %s22, 0
      %p116 = por %p114, %p115
      %p117 = scmp.ne.s32.totalorder %s103, %s104
      %p118 = scmp.eq.s32.totalorder %s23, 1
      %p119 = por %p117, %p118
      %p121 = scmp.ne.s32.totalorder %s104, %s120
      %p122 = scmp.eq.s32.totalorder %s23, 0
      %p123 = por %p121, %p122
      %s124 = ssub.s32 %s17, %s24
      %p125 = scmp.eq.s32.totalorder %s124, 0
      %s127 = sadd.s32 %s126, 1
      %s128 = scalar_select %p125, %s126, %s127
      %p131 = pneg %p125
      %p132 = scmp.eq.s32.totalorder %s17, 1
      %p133 = por %p131, %p132
      %p134 = scmp.ne.s32.totalorder %s126, %s129
      %p135 = scmp.eq.s32.totalorder %s17, 0
      %p136 = por %p134, %p135
      %p137 = scmp.ne.s32.totalorder %s126, %s129
      %p138 = scmp.eq.s32.totalorder %s22, 1
      %p139 = por %p137, %p138
      %p140 = scmp.ne.s32.totalorder %s129, %s130
      %p141 = scmp.eq.s32.totalorder %s22, 0
      %p142 = por %p140, %p141
      %p143 = scmp.ne.s32.totalorder %s129, %s130
      %p144 = scmp.eq.s32.totalorder %s23, 1
      %p145 = por %p143, %p144
      %p147 = scmp.ne.s32.totalorder %s130, %s146
      %p148 = scmp.eq.s32.totalorder %s23, 0
      %p149 = por %p147, %p148
      %p150 = scmp.le.s32.totalorder 1, %s17
      %p151 = scmp.lt.s32.totalorder %s17, 3
      %p152 = pnand %p150, %p151
      %p153 = pneg %p152
      // Predicated region
      $region9: #{tpu_custom_call.1} parent=5 // pred_check
        _
      $region10: #{tpu_custom_call.1} parent=5 // pred_check_branch
        %155 = sbr.rel (%p152) target = $region12
      $region11: #{tpu_custom_call.1} parent=5 // pred_region
        %s156 = ssub.s32 %s17, 1
        // Predicated region
        $region13: #{tpu_custom_call.1} parent=11 // pred_check
          %p157 = pneg %p90
        $region14: #{tpu_custom_call.1} parent=11 // pred_check_branch
          %159 = sbr.rel (%p157) target = $region16
        $region15: #{tpu_custom_call.1} parent=11 // pred_region
          _
        $region16: #{tpu_custom_call.1} parent=11 // pred_fallthru
          _
      $region12: #{tpu_custom_call.1} parent=5 // pred_fallthru
        _
      %p160 = scmp.lt.s32.totalorder %s17, 2
      // Predicated region
      $region17: #{tpu_custom_call.1} parent=5 // pred_check
        %p161 = pneg %p160
      $region18: #{tpu_custom_call.1} parent=5 // pred_check_branch
        %163 = sbr.rel (%p161) target = $region20
      $region19: #{tpu_custom_call.1} parent=5 // pred_region
        // Predicated region
        $region21: #{tpu_custom_call.1} parent=19 // pred_check
          %p164 = pneg %p37
        $region22: #{tpu_custom_call.1} parent=19 // pred_check_branch
          %166 = sbr.rel (%p164) target = $region24
        $region23: #{tpu_custom_call.1} parent=19 // pred_region
          %p167 = scmp.lt.s32.totalorder %s17, 1
          %s168 = scalar_select %p167, %s17, 1
          %s169 = scalar_lea.vmem %s0, %s168
        $region24: #{tpu_custom_call.1} parent=19 // pred_fallthru
          _
        // Predicated region
        $region25: #{tpu_custom_call.1} parent=19 // pred_check
          %p170 = pneg %p63
        $region26: #{tpu_custom_call.1} parent=19 // pred_check_branch
          %172 = sbr.rel (%p170) target = $region28
        $region27: #{tpu_custom_call.1} parent=19 // pred_region
          %s173 = smul.u32 16, %s17
          %p174 = scmp.lt.s32.totalorder %s173, 31
          %s175 = scalar_select %p174, %s173, 31
          %s176 = smul.addr %s175, 4
          %s177 = scalar_lea.vmem %s1, %s176
          %s178 = smul.u32 16, %s17
        $region28: #{tpu_custom_call.1} parent=19 // pred_fallthru
          _
      $region20: #{tpu_custom_call.1} parent=5 // pred_fallthru
        _
      %p179 = scmp.le.s32.totalorder 1, %s17
      %p180 = scmp.lt.s32.totalorder %s17, 3
      %p181 = pnand %p179, %p180
      %p182 = pneg %p181
      // Predicated region
      $region29: #{tpu_custom_call.1} parent=5 // pred_check
        _
      $region30: #{tpu_custom_call.1} parent=5 // pred_check_branch
        %184 = sbr.rel (%p181) target = $region32
      $region31: #{tpu_custom_call.1} parent=5 // pred_region
        %s185 = ssub.s32 %s17, 1
        %p186 = scmp.lt.s32.totalorder %s22, 1
        %s187 = scalar_select %p186, %s22, 1
        %s188 = scalar_lea.vmem %s0, %s187
        %p189 = pneg %p43
        %p190 = pneg %p40
        %s191 = smul.u32 16, %s22
        %p192 = scmp.lt.s32.totalorder %s191, 31
        %s193 = scalar_select %p192, %s191, 31
        %s194 = smul.addr %s193, 4
        %s195 = scalar_lea.vmem %s1, %s194
        %p196 = pneg %p69
        %p197 = pneg %p66
        %p198 = pneg %p90
        %p199 = pneg %p87
        %p200 = pneg %p116
        %p201 = pneg %p113
        %s202 = sand.u32 %s103, 1
        %s203 = scalar_lea.sflag [#allocation3], %s202
        %s204 = sand.u32 %s103, 1
        %s205 = scalar_lea.vmem [#allocation2], %s204
        %p206 = pneg %p142
        %p207 = pneg %p139
        %s208 = sand.u32 %s129, 1
        %s209 = scalar_lea.sflag [#allocation5], %s208
        %s210 = sand.u32 %s129, 1
        %s211 = scalar_lea.vmem [#allocation4], %s210
        %p212 = scmp.lt.s32.totalorder %s22, 1
        %s213 = scalar_select %p212, %s22, 1
        %s214 = scalar_lea.vmem %s0, %s213
        %s215 = smul.u32 16, %s22
        %p216 = scmp.lt.s32.totalorder %s215, 31
        %s217 = scalar_select %p216, %s215, 31
        %s218 = smul.addr %s217, 4
        %s219 = scalar_lea.vmem %s1, %s218
        %s220 = smul.u32 16, %s22
        %v221 = vld [vmem:[%s219] sm:$0xf]
        %v222 = vld [vmem:[%s219 + $0x4] sm:$0xf]
        %v223 = vld [vmem:[%s219 + $0x8] sm:$0xf]
        %v224 = vld [vmem:[%s219 + $0xc] sm:$0xf]
        %v225 = vld [vmem:[%s219 + $0x10] sm:$0xf]
        %v226 = vld [vmem:[%s219 + $0x14] sm:$0xf]
        %v227 = vld [vmem:[%s219 + $0x18] sm:$0xf]
        %v228 = vld [vmem:[%s219 + $0x1c] sm:$0xf]
        %v229 = vld [vmem:[%s219 + $0x20] sm:$0xf]
        %v230 = vld [vmem:[%s219 + $0x24] sm:$0xf]
        %v231 = vld [vmem:[%s219 + $0x28] sm:$0xf]
        %v232 = vld [vmem:[%s219 + $0x2c] sm:$0xf]
        %v233 = vld [vmem:[%s219 + $0x30] sm:$0xf]
        %v234 = vld [vmem:[%s219 + $0x34] sm:$0xf]
        %v235 = vld [vmem:[%s219 + $0x38] sm:$0xf]
        %v236 = vld [vmem:[%s219 + $0x3c] sm:$0xf]
        %v237 = vld [vmem:[%s214] sm:$0x1]
        %v238 = vlaneseq
        %v239 = vshrl.u32 %v238, 7
        %v240 = vadd.s32 %v239, 8
        %v241 = vadd.s32 %v239, 16
        %v242 = vadd.s32 %v239, 24
        %v243 = vadd.s32 %v239, 32
        %v244 = vadd.s32 %v239, 40
        %v245 = vadd.s32 %v239, 48
        %v246 = vadd.s32 %v239, 56
        %v247 = vld [vmem:[%s2] sm:$0xf]
        %v248 = vld [vmem:[%s2 + $0x4] sm:$0xf]
        %v249 = vld [vmem:[%s2 + $0x8] sm:$0xf]
        %v250 = vld [vmem:[%s2 + $0xc] sm:$0xf]
        %v251 = vld [vmem:[%s2 + $0x10] sm:$0xf]
        %v252 = vld [vmem:[%s2 + $0x14] sm:$0xf]
        %v253 = vld [vmem:[%s2 + $0x18] sm:$0xf]
        %v254 = vld [vmem:[%s2 + $0x1c] sm:$0xf]
        %v263 = vunpack.c.l.b16 %v247
        %v264 = vunpack.c.l.b16 %v248
        %v265 = vunpack.c.l.b16 %v249
        %v266 = vunpack.c.l.b16 %v250
        %v267 = vunpack.c.l.b16 %v251
        %v268 = vunpack.c.l.b16 %v252
        %v269 = vunpack.c.l.b16 %v253
        %v270 = vunpack.c.l.b16 %v254
        %v271 = vpack.c.b16 %v264, %v263
        %v272 = vpack.c.b16 %v266, %v265
        %v273 = vpack.c.b16 %v268, %v267
        %v274 = vpack.c.b16 %v270, %v269
        %v291 = vunpack.c.l.b16 %v221
        %v292 = vunpack.c.l.b16 %v222
        %v293 = vunpack.c.l.b16 %v223
        %v294 = vunpack.c.l.b16 %v224
        %v295 = vunpack.c.l.b16 %v225
        %v296 = vunpack.c.l.b16 %v226
        %v297 = vunpack.c.l.b16 %v227
        %v298 = vunpack.c.l.b16 %v228
        %v299 = vunpack.c.l.b16 %v229
        %v300 = vunpack.c.l.b16 %v230
        %v301 = vunpack.c.l.b16 %v231
        %v302 = vunpack.c.l.b16 %v232
        %v303 = vunpack.c.l.b16 %v233
        %v304 = vunpack.c.l.b16 %v234
        %v305 = vunpack.c.l.b16 %v235
        %v306 = vunpack.c.l.b16 %v236
        %v307 = vpack.c.b16 %v292, %v291
        %v308 = vpack.c.b16 %v294, %v293
        %v309 = vpack.c.b16 %v296, %v295
        %v310 = vpack.c.b16 %v298, %v297
        %v311 = vpack.c.b16 %v300, %v299
        %v312 = vpack.c.b16 %v302, %v301
        %v313 = vpack.c.b16 %v304, %v303
        %v314 = vpack.c.b16 %v306, %v305
        %vm315 = vcmask 269312
        %v317 = vsel %vm315, %v271, 0
        %v320 = vsel %vm315, %v272, 0
        %v323 = vsel %vm315, %v273, 0
        %v326 = vsel %vm315, %v274, 0
        %v329 = vsel %vm315, %v307, 0
        %v332 = vsel %vm315, %v308, 0
        %v335 = vsel %vm315, %v309, 0
        %v338 = vsel %vm315, %v310, 0
        %v341 = vsel %vm315, %v311, 0
        %v344 = vsel %vm315, %v312, 0
        %v347 = vsel %vm315, %v313, 0
        %v350 = vsel %vm315, %v314, 0
        %352 = vmatpush.bf16.xpose.msra.mxu0 %v350
        %353 = vmatpush.bf16.xpose.msra.mxu0 %v347
        %354 = vmatpush.bf16.xpose.msra.mxu0 %v344
        %355 = vmatpush.bf16.xpose.msra.mxu0 %v341
        %356 = vmatpush.bf16.xpose.msra.mxu0 %v338
        %357 = vmatpush.bf16.xpose.msra.mxu0 %v335
        %358 = vmatpush.bf16.xpose.msra.mxu0 %v332
        %359 = vmatpush.bf16.xpose.msra.mxu0 %v329
        %360 = vmatmul.bf16.gmra.mxu0 %v317
        %v361 = vpop.f32.mrf.mxu0
        %v362 = vadd.f32 0.0, %v361
        %v363 = vpop.f32.mrf.mxu0
        %v364 = vadd.f32 0.0, %v363
        %365 = vmatmul.bf16.gmra.mxu0 %v320
        %v366 = vpop.f32.mrf.mxu0
        %v367 = vadd.f32 0.0, %v366
        %v368 = vpop.f32.mrf.mxu0
        %v369 = vadd.f32 0.0, %v368
        %370 = vmatmul.bf16.gmra.mxu0 %v323
        %v371 = vpop.f32.mrf.mxu0
        %v372 = vadd.f32 0.0, %v371
        %v373 = vpop.f32.mrf.mxu0
        %v374 = vadd.f32 0.0, %v373
        %375 = vmatmul.bf16.gmra.mxu0 %v326
        %v376 = vpop.f32.mrf.mxu0
        %v377 = vadd.f32 0.0, %v376
        %v378 = vpop.f32.mrf.mxu0
        %v379 = vadd.f32 0.0, %v378
        %380 = vdwg.mxu0
        %v381 = vmax.f32 %v362, %v372
        %v382 = vmax.f32 %v364, %v374
        %v383 = vmax.f32 %v367, %v377
        %v384 = vmax.f32 %v369, %v379
        %v385 = vmax.f32 %v381, %v382
        %v386 = vmax.f32 %v383, %v384
        %v387 = vmax.f32 %v385, %v386
        %v388 = vrot.slane %v387, 4
        %v389 = vmax.f32 %v387, %v388
        %v390 = vrot.slane %v389, 2
        %v391 = vmax.f32 %v389, %v390
        %v392 = vrot.slane %v391, 1
        %v393 = vmax.f32 %v391, %v392
        %v394 = vsub.f32 %v362, %v393
        %v395 = vsub.f32 %v364, %v393
        %v396 = vsub.f32 %v367, %v393
        %v397 = vsub.f32 %v369, %v393
        %v398 = vsub.f32 %v372, %v393
        %v399 = vsub.f32 %v374, %v393
        %v400 = vsub.f32 %v377, %v393
        %v401 = vsub.f32 %v379, %v393
        %v402 = vsub.f32 -inf, %v393
        %v403 = vmul.f32 %v402, 1.442695
        %v404 = vpow.pop %v403
        %v405 = vmul.f32 %v404, 0.0
        %v406 = vmul.f32 %v394, 1.442695
        %v407 = vpow.pop %v406
        %v408 = vmul.f32 %v395, 1.442695
        %v409 = vpow.pop %v408
        %v410 = vmul.f32 %v396, 1.442695
        %v411 = vpow.pop %v410
        %v412 = vmul.f32 %v397, 1.442695
        %v413 = vpow.pop %v412
        %v414 = vmul.f32 %v398, 1.442695
        %v415 = vpow.pop %v414
        %v416 = vmul.f32 %v399, 1.442695
        %v417 = vpow.pop %v416
        %v418 = vmul.f32 %v400, 1.442695
        %v419 = vpow.pop %v418
        %v420 = vmul.f32 %v401, 1.442695
        %v421 = vpow.pop %v420
        %v422 = vadd.f32 %v407, %v409
        %v423 = vadd.f32 %v422, %v411
        %v424 = vadd.f32 %v423, %v413
        %v425 = vadd.f32 %v424, %v415
        %v426 = vadd.f32 %v425, %v417
        %v427 = vadd.f32 %v426, %v419
        %v428 = vadd.f32 %v427, %v421
        %v429 = vrot.slane %v428, 4
        %v430 = vadd.f32 %v428, %v429
        %v431 = vrot.slane %v430, 2
        %v432 = vadd.f32 %v430, %v431
        %v433 = vrot.slane %v432, 1
        %v434 = vadd.f32 %v432, %v433
        %v435 = vadd.f32 %v405, %v434
        %vm436 = vcmp.ge.f32.partialorder %v394, 0.0
        %vm437 = vcmp.ge.f32.partialorder %v395, 0.0
        %vm438 = vcmp.ge.f32.partialorder %v396, 0.0
        %vm439 = vcmp.ge.f32.partialorder %v397, 0.0
        %vm440 = vcmp.ge.f32.partialorder %v398, 0.0
        %vm441 = vcmp.ge.f32.partialorder %v399, 0.0
        %vm442 = vcmp.ge.f32.partialorder %v400, 0.0
        %vm443 = vcmp.ge.f32.partialorder %v401, 0.0
        %v444 = vsel %vm436, %v239, 64
        %v445 = vsel %vm437, %v240, 64
        %v446 = vsel %vm438, %v241, 64
        %v447 = vsel %vm439, %v242, 64
        %v448 = vsel %vm440, %v243, 64
        %v449 = vsel %vm441, %v244, 64
        %v450 = vsel %vm442, %v245, 64
        %v451 = vsel %vm443, %v246, 64
        %vm452 = vcmp.lt.s32.totalorder %v444, %v448
        %v453 = vsel %vm452, %v444, %v448
        %vm454 = vcmp.lt.s32.totalorder %v445, %v449
        %v455 = vsel %vm454, %v445, %v449
        %vm456 = vcmp.lt.s32.totalorder %v446, %v450
        %v457 = vsel %vm456, %v446, %v450
        %vm458 = vcmp.lt.s32.totalorder %v447, %v451
        %v459 = vsel %vm458, %v447, %v451
        %vm460 = vcmp.lt.s32.totalorder %v453, %v455
        %v461 = vsel %vm460, %v453, %v455
        %vm462 = vcmp.lt.s32.totalorder %v457, %v459
        %v463 = vsel %vm462, %v457, %v459
        %vm464 = vcmp.lt.s32.totalorder %v461, %v463
        %v465 = vsel %vm464, %v461, %v463
        %v466 = vrot.slane %v465, 4
        %vm467 = vcmp.lt.s32.totalorder %v465, %v466
        %v468 = vsel %vm467, %v465, %v466
        %v469 = vrot.slane %v468, 2
        %vm470 = vcmp.lt.s32.totalorder %v468, %v469
        %v471 = vsel %vm470, %v468, %v469
        %v472 = vrot.slane %v471, 1
        %vm473 = vcmp.lt.s32.totalorder %v471, %v472
        %v474 = vsel %vm473, %v471, %v472
        %vm475 = vcmp.gt.f32.partialorder %v393, -inf
        %v476 = vsel %vm475, %v474, 0
        %v477 = vperm.slane %v237, 0
        %vm478 = vcmp.eq.s32.totalorder %v239, %v477
        %vm479 = vcmp.eq.s32.totalorder %v240, %v477
        %vm480 = vcmp.eq.s32.totalorder %v241, %v477
        %vm481 = vcmp.eq.s32.totalorder %v242, %v477
        %vm482 = vcmp.eq.s32.totalorder %v243, %v477
        %vm483 = vcmp.eq.s32.totalorder %v244, %v477
        %vm484 = vcmp.eq.s32.totalorder %v245, %v477
        %vm485 = vcmp.eq.s32.totalorder %v246, %v477
        %v486 = vsel %vm478, %v362, 0.0
        %v487 = vsel %vm479, %v364, 0.0
        %v488 = vsel %vm480, %v367, 0.0
        %v489 = vsel %vm481, %v369, 0.0
        %v490 = vsel %vm482, %v372, 0.0
        %v491 = vsel %vm483, %v374, 0.0
        %v492 = vsel %vm484, %v377, 0.0
        %v493 = vsel %vm485, %v379, 0.0
        %v494 = vadd.f32 %v486, %v487
        %v495 = vadd.f32 %v494, %v488
        %v496 = vadd.f32 %v495, %v489
        %v497 = vadd.f32 %v496, %v490
        %v498 = vadd.f32 %v497, %v491
        %v499 = vadd.f32 %v498, %v492
        %v500 = vadd.f32 %v499, %v493
        %v501 = vrot.slane %v500, 4
        %v502 = vadd.f32 %v500, %v501
        %v503 = vrot.slane %v502, 2
        %v504 = vadd.f32 %v502, %v503
        %v505 = vrot.slane %v504, 1
        %v506 = vadd.f32 %v504, %v505
        %v507 = vadd.f32 %v506, 0.0
        %v508 = vld [vmem:[%s2 + $0x20] sm:$0xf]
        %v509 = vld [vmem:[%s2 + $0x24] sm:$0xf]
        %v510 = vld [vmem:[%s2 + $0x28] sm:$0xf]
        %v511 = vld [vmem:[%s2 + $0x2c] sm:$0xf]
        %v512 = vld [vmem:[%s2 + $0x30] sm:$0xf]
        %v513 = vld [vmem:[%s2 + $0x34] sm:$0xf]
        %v514 = vld [vmem:[%s2 + $0x38] sm:$0xf]
        %v515 = vld [vmem:[%s2 + $0x3c] sm:$0xf]
        %v524 = vunpack.c.l.b16 %v508
        %v525 = vunpack.c.l.b16 %v509
        %v526 = vunpack.c.l.b16 %v510
        %v527 = vunpack.c.l.b16 %v511
        %v528 = vunpack.c.l.b16 %v512
        %v529 = vunpack.c.l.b16 %v513
        %v530 = vunpack.c.l.b16 %v514
        %v531 = vunpack.c.l.b16 %v515
        %v532 = vpack.c.b16 %v525, %v524
        %v533 = vpack.c.b16 %v527, %v526
        %v534 = vpack.c.b16 %v529, %v528
        %v535 = vpack.c.b16 %v531, %v530
        %v537 = vsel %vm315, %v532, 0
        %v540 = vsel %vm315, %v533, 0
        %v543 = vsel %vm315, %v534, 0
        %v546 = vsel %vm315, %v535, 0
        %548 = vmatpush.bf16.xpose.msra.mxu0 %v350
        %549 = vmatpush.bf16.xpose.msra.mxu0 %v347
        %550 = vmatpush.bf16.xpose.msra.mxu0 %v344
        %551 = vmatpush.bf16.xpose.msra.mxu0 %v341
        %552 = vmatpush.bf16.xpose.msra.mxu0 %v338
        %553 = vmatpush.bf16.xpose.msra.mxu0 %v335
        %554 = vmatpush.bf16.xpose.msra.mxu0 %v332
        %555 = vmatpush.bf16.xpose.msra.mxu0 %v329
        %556 = vmatmul.bf16.gmra.mxu0 %v537
        %v557 = vpop.f32.mrf.mxu0
        %v558 = vadd.f32 0.0, %v557
        %v559 = vpop.f32.mrf.mxu0
        %v560 = vadd.f32 0.0, %v559
        %561 = vmatmul.bf16.gmra.mxu0 %v540
        %v562 = vpop.f32.mrf.mxu0
        %v563 = vadd.f32 0.0, %v562
        %v564 = vpop.f32.mrf.mxu0
        %v565 = vadd.f32 0.0, %v564
        %566 = vmatmul.bf16.gmra.mxu0 %v543
        %v567 = vpop.f32.mrf.mxu0
        %v568 = vadd.f32 0.0, %v567
        %v569 = vpop.f32.mrf.mxu0
        %v570 = vadd.f32 0.0, %v569
        %571 = vmatmul.bf16.gmra.mxu0 %v546
        %v572 = vpop.f32.mrf.mxu0
        %v573 = vadd.f32 0.0, %v572
        %v574 = vpop.f32.mrf.mxu0
        %v575 = vadd.f32 0.0, %v574
        %576 = vdwg.mxu0
        %v577 = vmax.f32 %v558, %v568
        %v578 = vmax.f32 %v560, %v570
        %v579 = vmax.f32 %v563, %v573
        %v580 = vmax.f32 %v565, %v575
        %v581 = vmax.f32 %v577, %v578
        %v582 = vmax.f32 %v579, %v580
        %v583 = vmax.f32 %v581, %v582
        %v584 = vrot.slane %v583, 4
        %v585 = vmax.f32 %v583, %v584
        %v586 = vrot.slane %v585, 2
        %v587 = vmax.f32 %v585, %v586
        %v588 = vrot.slane %v587, 1
        %v589 = vmax.f32 %v587, %v588
        %v590 = vmax.f32 %v393, %v589
        %v591 = vsub.f32 %v558, %v590
        %v592 = vsub.f32 %v560, %v590
        %v593 = vsub.f32 %v563, %v590
        %v594 = vsub.f32 %v565, %v590
        %v595 = vsub.f32 %v568, %v590
        %v596 = vsub.f32 %v570, %v590
        %v597 = vsub.f32 %v573, %v590
        %v598 = vsub.f32 %v575, %v590
        %v599 = vsub.f32 %v393, %v590
        %v600 = vmul.f32 %v599, 1.442695
        %v601 = vpow.pop %v600
        %v602 = vmul.f32 %v435, %v601
        %v603 = vmul.f32 %v591, 1.442695
        %v604 = vpow.pop %v603
        %v605 = vmul.f32 %v592, 1.442695
        %v606 = vpow.pop %v605
        %v607 = vmul.f32 %v593, 1.442695
        %v608 = vpow.pop %v607
        %v609 = vmul.f32 %v594, 1.442695
        %v610 = vpow.pop %v609
        %v611 = vmul.f32 %v595, 1.442695
        %v612 = vpow.pop %v611
        %v613 = vmul.f32 %v596, 1.442695
        %v614 = vpow.pop %v613
        %v615 = vmul.f32 %v597, 1.442695
        %v616 = vpow.pop %v615
        %v617 = vmul.f32 %v598, 1.442695
        %v618 = vpow.pop %v617
        %v619 = vadd.f32 %v604, %v606
        %v620 = vadd.f32 %v619, %v608
        %v621 = vadd.f32 %v620, %v610
        %v622 = vadd.f32 %v621, %v612
        %v623 = vadd.f32 %v622, %v614
        %v624 = vadd.f32 %v623, %v616
        %v625 = vadd.f32 %v624, %v618
        %v626 = vrot.slane %v625, 4
        %v627 = vadd.f32 %v625, %v626
        %v628 = vrot.slane %v627, 2
        %v629 = vadd.f32 %v627, %v628
        %v630 = vrot.slane %v629, 1
        %v631 = vadd.f32 %v629, %v630
        %v632 = vadd.f32 %v602, %v631
        %vm633 = vcmp.ge.f32.partialorder %v591, 0.0
        %vm634 = vcmp.ge.f32.partialorder %v592, 0.0
        %vm635 = vcmp.ge.f32.partialorder %v593, 0.0
        %vm636 = vcmp.ge.f32.partialorder %v594, 0.0
        %vm637 = vcmp.ge.f32.partialorder %v595, 0.0
        %vm638 = vcmp.ge.f32.partialorder %v596, 0.0
        %vm639 = vcmp.ge.f32.partialorder %v597, 0.0
        %vm640 = vcmp.ge.f32.partialorder %v598, 0.0
        %v641 = vsel %vm633, %v239, 64
        %v642 = vsel %vm634, %v240, 64
        %v643 = vsel %vm635, %v241, 64
        %v644 = vsel %vm636, %v242, 64
        %v645 = vsel %vm637, %v243, 64
        %v646 = vsel %vm638, %v244, 64
        %v647 = vsel %vm639, %v245, 64
        %v648 = vsel %vm640, %v246, 64
        %vm649 = vcmp.lt.s32.totalorder %v641, %v645
        %v650 = vsel %vm649, %v641, %v645
        %vm651 = vcmp.lt.s32.totalorder %v642, %v646
        %v652 = vsel %vm651, %v642, %v646
        %vm653 = vcmp.lt.s32.totalorder %v643, %v647
        %v654 = vsel %vm653, %v643, %v647
        %vm655 = vcmp.lt.s32.totalorder %v644, %v648
        %v656 = vsel %vm655, %v644, %v648
        %vm657 = vcmp.lt.s32.totalorder %v650, %v652
        %v658 = vsel %vm657, %v650, %v652
        %vm659 = vcmp.lt.s32.totalorder %v654, %v656
        %v660 = vsel %vm659, %v654, %v656
        %vm661 = vcmp.lt.s32.totalorder %v658, %v660
        %v662 = vsel %vm661, %v658, %v660
        %v663 = vrot.slane %v662, 4
        %vm664 = vcmp.lt.s32.totalorder %v662, %v663
        %v665 = vsel %vm664, %v662, %v663
        %v666 = vrot.slane %v665, 2
        %vm667 = vcmp.lt.s32.totalorder %v665, %v666
        %v668 = vsel %vm667, %v665, %v666
        %v669 = vrot.slane %v668, 1
        %vm670 = vcmp.lt.s32.totalorder %v668, %v669
        %v671 = vsel %vm670, %v668, %v669
        %vm672 = vcmp.gt.f32.partialorder %v589, %v393
        %v673 = vadd.s32 %v671, 64
        %v674 = vsel %vm672, %v673, %v476
        %v675 = vsub.s32 %v237, 64
        %v676 = vperm.slane %v675, 0
        %vm677 = vcmp.eq.s32.totalorder %v239, %v676
        %vm678 = vcmp.eq.s32.totalorder %v240, %v676
        %vm679 = vcmp.eq.s32.totalorder %v241, %v676
        %vm680 = vcmp.eq.s32.totalorder %v242, %v676
        %vm681 = vcmp.eq.s32.totalorder %v243, %v676
        %vm682 = vcmp.eq.s32.totalorder %v244, %v676
        %vm683 = vcmp.eq.s32.totalorder %v245, %v676
        %vm684 = vcmp.eq.s32.totalorder %v246, %v676
        %v685 = vsel %vm677, %v558, 0.0
        %v686 = vsel %vm678, %v560, 0.0
        %v687 = vsel %vm679, %v563, 0.0
        %v688 = vsel %vm680, %v565, 0.0
        %v689 = vsel %vm681, %v568, 0.0
        %v690 = vsel %vm682, %v570, 0.0
        %v691 = vsel %vm683, %v573, 0.0
        %v692 = vsel %vm684, %v575, 0.0
        %v693 = vadd.f32 %v685, %v686
        %v694 = vadd.f32 %v693, %v687
        %v695 = vadd.f32 %v694, %v688
        %v696 = vadd.f32 %v695, %v689
        %v697 = vadd.f32 %v696, %v690
        %v698 = vadd.f32 %v697, %v691
        %v699 = vadd.f32 %v698, %v692
        %v700 = vrot.slane %v699, 4
        %v701 = vadd.f32 %v699, %v700
        %v702 = vrot.slane %v701, 2
        %v703 = vadd.f32 %v701, %v702
        %v704 = vrot.slane %v703, 1
        %v705 = vadd.f32 %v703, %v704
        %v706 = vadd.f32 %v507, %v705
        %v707 = vld [vmem:[%s2 + $0x40] sm:$0xf]
        %v708 = vld [vmem:[%s2 + $0x44] sm:$0xf]
        %v709 = vld [vmem:[%s2 + $0x48] sm:$0xf]
        %v710 = vld [vmem:[%s2 + $0x4c] sm:$0xf]
        %v711 = vld [vmem:[%s2 + $0x50] sm:$0xf]
        %v712 = vld [vmem:[%s2 + $0x54] sm:$0xf]
        %v713 = vld [vmem:[%s2 + $0x58] sm:$0xf]
        %v714 = vld [vmem:[%s2 + $0x5c] sm:$0xf]
        %v723 = vunpack.c.l.b16 %v707
        %v724 = vunpack.c.l.b16 %v708
        %v725 = vunpack.c.l.b16 %v709
        %v726 = vunpack.c.l.b16 %v710
        %v727 = vunpack.c.l.b16 %v711
        %v728 = vunpack.c.l.b16 %v712
        %v729 = vunpack.c.l.b16 %v713
        %v730 = vunpack.c.l.b16 %v714
        %v731 = vpack.c.b16 %v724, %v723
        %v732 = vpack.c.b16 %v726, %v725
        %v733 = vpack.c.b16 %v728, %v727
        %v734 = vpack.c.b16 %v730, %v729
        %v736 = vsel %vm315, %v731, 0
        %v739 = vsel %vm315, %v732, 0
        %v742 = vsel %vm315, %v733, 0
        %v745 = vsel %vm315, %v734, 0
        %747 = vmatpush.bf16.xpose.msra.mxu0 %v350
        %748 = vmatpush.bf16.xpose.msra.mxu0 %v347
        %749 = vmatpush.bf16.xpose.msra.mxu0 %v344
        %750 = vmatpush.bf16.xpose.msra.mxu0 %v341
        %751 = vmatpush.bf16.xpose.msra.mxu0 %v338
        %752 = vmatpush.bf16.xpose.msra.mxu0 %v335
        %753 = vmatpush.bf16.xpose.msra.mxu0 %v332
        %754 = vmatpush.bf16.xpose.msra.mxu0 %v329
        %755 = vmatmul.bf16.gmra.mxu0 %v736
        %v756 = vpop.f32.mrf.mxu0
        %v757 = vadd.f32 0.0, %v756
        %v758 = vpop.f32.mrf.mxu0
        %v759 = vadd.f32 0.0, %v758
        %760 = vmatmul.bf16.gmra.mxu0 %v739
        %v761 = vpop.f32.mrf.mxu0
        %v762 = vadd.f32 0.0, %v761
        %v763 = vpop.f32.mrf.mxu0
        %v764 = vadd.f32 0.0, %v763
        %765 = vmatmul.bf16.gmra.mxu0 %v742
        %v766 = vpop.f32.mrf.mxu0
        %v767 = vadd.f32 0.0, %v766
        %v768 = vpop.f32.mrf.mxu0
        %v769 = vadd.f32 0.0, %v768
        %770 = vmatmul.bf16.gmra.mxu0 %v745
        %v771 = vpop.f32.mrf.mxu0
        %v772 = vadd.f32 0.0, %v771
        %v773 = vpop.f32.mrf.mxu0
        %v774 = vadd.f32 0.0, %v773
        %775 = vdwg.mxu0
        %v776 = vmax.f32 %v757, %v767
        %v777 = vmax.f32 %v759, %v769
        %v778 = vmax.f32 %v762, %v772
        %v779 = vmax.f32 %v764, %v774
        %v780 = vmax.f32 %v776, %v777
        %v781 = vmax.f32 %v778, %v779
        %v782 = vmax.f32 %v780, %v781
        %v783 = vrot.slane %v782, 4
        %v784 = vmax.f32 %v782, %v783
        %v785 = vrot.slane %v784, 2
        %v786 = vmax.f32 %v784, %v785
        %v787 = vrot.slane %v786, 1
        %v788 = vmax.f32 %v786, %v787
        %v789 = vmax.f32 %v590, %v788
        %v790 = vsub.f32 %v757, %v789
        %v791 = vsub.f32 %v759, %v789
        %v792 = vsub.f32 %v762, %v789
        %v793 = vsub.f32 %v764, %v789
        %v794 = vsub.f32 %v767, %v789
        %v795 = vsub.f32 %v769, %v789
        %v796 = vsub.f32 %v772, %v789
        %v797 = vsub.f32 %v774, %v789
        %v798 = vsub.f32 %v590, %v789
        %v799 = vmul.f32 %v798, 1.442695
        %v800 = vpow.pop %v799
        %v801 = vmul.f32 %v632, %v800
        %v802 = vmul.f32 %v790, 1.442695
        %v803 = vpow.pop %v802
        %v804 = vmul.f32 %v791, 1.442695
        %v805 = vpow.pop %v804
        %v806 = vmul.f32 %v792, 1.442695
        %v807 = vpow.pop %v806
        %v808 = vmul.f32 %v793, 1.442695
        %v809 = vpow.pop %v808
        %v810 = vmul.f32 %v794, 1.442695
        %v811 = vpow.pop %v810
        %v812 = vmul.f32 %v795, 1.442695
        %v813 = vpow.pop %v812
        %v814 = vmul.f32 %v796, 1.442695
        %v815 = vpow.pop %v814
        %v816 = vmul.f32 %v797, 1.442695
        %v817 = vpow.pop %v816
        %v818 = vadd.f32 %v803, %v805
        %v819 = vadd.f32 %v818, %v807
        %v820 = vadd.f32 %v819, %v809
        %v821 = vadd.f32 %v820, %v811
        %v822 = vadd.f32 %v821, %v813
        %v823 = vadd.f32 %v822, %v815
        %v824 = vadd.f32 %v823, %v817
        %v825 = vrot.slane %v824, 4
        %v826 = vadd.f32 %v824, %v825
        %v827 = vrot.slane %v826, 2
        %v828 = vadd.f32 %v826, %v827
        %v829 = vrot.slane %v828, 1
        %v830 = vadd.f32 %v828, %v829
        %v831 = vadd.f32 %v801, %v830
        %vm832 = vcmp.ge.f32.partialorder %v790, 0.0
        %vm833 = vcmp.ge.f32.partialorder %v791, 0.0
        %vm834 = vcmp.ge.f32.partialorder %v792, 0.0
        %vm835 = vcmp.ge.f32.partialorder %v793, 0.0
        %vm836 = vcmp.ge.f32.partialorder %v794, 0.0
        %vm837 = vcmp.ge.f32.partialorder %v795, 0.0
        %vm838 = vcmp.ge.f32.partialorder %v796, 0.0
        %vm839 = vcmp.ge.f32.partialorder %v797, 0.0
        %v840 = vsel %vm832, %v239, 64
        %v841 = vsel %vm833, %v240, 64
        %v842 = vsel %vm834, %v241, 64
        %v843 = vsel %vm835, %v242, 64
        %v844 = vsel %vm836, %v243, 64
        %v845 = vsel %vm837, %v244, 64
        %v846 = vsel %vm838, %v245, 64
        %v847 = vsel %vm839, %v246, 64
        %vm848 = vcmp.lt.s32.totalorder %v840, %v844
        %v849 = vsel %vm848, %v840, %v844
        %vm850 = vcmp.lt.s32.totalorder %v841, %v845
        %v851 = vsel %vm850, %v841, %v845
        %vm852 = vcmp.lt.s32.totalorder %v842, %v846
        %v853 = vsel %vm852, %v842, %v846
        %vm854 = vcmp.lt.s32.totalorder %v843, %v847
        %v855 = vsel %vm854, %v843, %v847
        %vm856 = vcmp.lt.s32.totalorder %v849, %v851
        %v857 = vsel %vm856, %v849, %v851
        %vm858 = vcmp.lt.s32.totalorder %v853, %v855
        %v859 = vsel %vm858, %v853, %v855
        %vm860 = vcmp.lt.s32.totalorder %v857, %v859
        %v861 = vsel %vm860, %v857, %v859
        %v862 = vrot.slane %v861, 4
        %vm863 = vcmp.lt.s32.totalorder %v861, %v862
        %v864 = vsel %vm863, %v861, %v862
        %v865 = vrot.slane %v864, 2
        %vm866 = vcmp.lt.s32.totalorder %v864, %v865
        %v867 = vsel %vm866, %v864, %v865
        %v868 = vrot.slane %v867, 1
        %vm869 = vcmp.lt.s32.totalorder %v867, %v868
        %v870 = vsel %vm869, %v867, %v868
        %vm871 = vcmp.gt.f32.partialorder %v788, %v590
        %v872 = vadd.s32 %v870, 128
        %v873 = vsel %vm871, %v872, %v674
        %v874 = vsub.s32 %v237, 128
        %v875 = vperm.slane %v874, 0
        %vm876 = vcmp.eq.s32.totalorder %v239, %v875
        %vm877 = vcmp.eq.s32.totalorder %v240, %v875
        %vm878 = vcmp.eq.s32.totalorder %v241, %v875
        %vm879 = vcmp.eq.s32.totalorder %v242, %v875
        %vm880 = vcmp.eq.s32.totalorder %v243, %v875
        %vm881 = vcmp.eq.s32.totalorder %v244, %v875
        %vm882 = vcmp.eq.s32.totalorder %v245, %v875
        %vm883 = vcmp.eq.s32.totalorder %v246, %v875
        %v884 = vsel %vm876, %v757, 0.0
        %v885 = vsel %vm877, %v759, 0.0
        %v886 = vsel %vm878, %v762, 0.0
        %v887 = vsel %vm879, %v764, 0.0
        %v888 = vsel %vm880, %v767, 0.0
        %v889 = vsel %vm881, %v769, 0.0
        %v890 = vsel %vm882, %v772, 0.0
        %v891 = vsel %vm883, %v774, 0.0
        %v892 = vadd.f32 %v884, %v885
        %v893 = vadd.f32 %v892, %v886
        %v894 = vadd.f32 %v893, %v887
        %v895 = vadd.f32 %v894, %v888
        %v896 = vadd.f32 %v895, %v889
        %v897 = vadd.f32 %v896, %v890
        %v898 = vadd.f32 %v897, %v891
        %v899 = vrot.slane %v898, 4
        %v900 = vadd.f32 %v898, %v899
        %v901 = vrot.slane %v900, 2
        %v902 = vadd.f32 %v900, %v901
        %v903 = vrot.slane %v902, 1
        %v904 = vadd.f32 %v902, %v903
        %v905 = vadd.f32 %v706, %v904
        %v906 = vld [vmem:[%s2 + $0x60] sm:$0xf]
        %v907 = vld [vmem:[%s2 + $0x64] sm:$0xf]
        %v908 = vld [vmem:[%s2 + $0x68] sm:$0xf]
        %v909 = vld [vmem:[%s2 + $0x6c] sm:$0xf]
        %v910 = vld [vmem:[%s2 + $0x70] sm:$0xf]
        %v911 = vld [vmem:[%s2 + $0x74] sm:$0xf]
        %v912 = vld [vmem:[%s2 + $0x78] sm:$0xf]
        %v913 = vld [vmem:[%s2 + $0x7c] sm:$0xf]
        %v922 = vunpack.c.l.b16 %v906
        %v923 = vunpack.c.l.b16 %v907
        %v924 = vunpack.c.l.b16 %v908
        %v925 = vunpack.c.l.b16 %v909
        %v926 = vunpack.c.l.b16 %v910
        %v927 = vunpack.c.l.b16 %v911
        %v928 = vunpack.c.l.b16 %v912
        %v929 = vunpack.c.l.b16 %v913
        %v930 = vpack.c.b16 %v923, %v922
        %v931 = vpack.c.b16 %v925, %v924
        %v932 = vpack.c.b16 %v927, %v926
        %v933 = vpack.c.b16 %v929, %v928
        %v935 = vsel %vm315, %v930, 0
        %v938 = vsel %vm315, %v931, 0
        %v941 = vsel %vm315, %v932, 0
        %v944 = vsel %vm315, %v933, 0
        %946 = vmatpush.bf16.xpose.msra.mxu0 %v350
        %947 = vmatpush.bf16.xpose.msra.mxu0 %v347
        %948 = vmatpush.bf16.xpose.msra.mxu0 %v344
        %949 = vmatpush.bf16.xpose.msra.mxu0 %v341
        %950 = vmatpush.bf16.xpose.msra.mxu0 %v338
        %951 = vmatpush.bf16.xpose.msra.mxu0 %v335
        %952 = vmatpush.bf16.xpose.msra.mxu0 %v332
        %953 = vmatpush.bf16.xpose.msra.mxu0 %v329
        %954 = vmatmul.bf16.gmra.mxu0 %v935
        %v955 = vpop.f32.mrf.mxu0
        %v956 = vadd.f32 0.0, %v955
        %v957 = vpop.f32.mrf.mxu0
        %v958 = vadd.f32 0.0, %v957
        %959 = vmatmul.bf16.gmra.mxu0 %v938
        %v960 = vpop.f32.mrf.mxu0
        %v961 = vadd.f32 0.0, %v960
        %v962 = vpop.f32.mrf.mxu0
        %v963 = vadd.f32 0.0, %v962
        %964 = vmatmul.bf16.gmra.mxu0 %v941
        %v965 = vpop.f32.mrf.mxu0
        %v966 = vadd.f32 0.0, %v965
        %v967 = vpop.f32.mrf.mxu0
        %v968 = vadd.f32 0.0, %v967
        %969 = vmatmul.bf16.gmra.mxu0 %v944
        %v970 = vpop.f32.mrf.mxu0
        %v971 = vadd.f32 0.0, %v970
        %v972 = vpop.f32.mrf.mxu0
        %v973 = vadd.f32 0.0, %v972
        %974 = vdwg.mxu0
        %v975 = vmax.f32 %v956, %v966
        %v976 = vmax.f32 %v958, %v968
        %v977 = vmax.f32 %v961, %v971
        %v978 = vmax.f32 %v963, %v973
        %v979 = vmax.f32 %v975, %v976
        %v980 = vmax.f32 %v977, %v978
        %v981 = vmax.f32 %v979, %v980
        %v982 = vrot.slane %v981, 4
        %v983 = vmax.f32 %v981, %v982
        %v984 = vrot.slane %v983, 2
        %v985 = vmax.f32 %v983, %v984
        %v986 = vrot.slane %v985, 1
        %v987 = vmax.f32 %v985, %v986
        %v988 = vmax.f32 %v789, %v987
        %v989 = vsub.f32 %v956, %v988
        %v990 = vsub.f32 %v958, %v988
        %v991 = vsub.f32 %v961, %v988
        %v992 = vsub.f32 %v963, %v988
        %v993 = vsub.f32 %v966, %v988
        %v994 = vsub.f32 %v968, %v988
        %v995 = vsub.f32 %v971, %v988
        %v996 = vsub.f32 %v973, %v988
        %v997 = vsub.f32 %v789, %v988
        %v998 = vmul.f32 %v997, 1.442695
        %v999 = vpow.pop %v998
        %v1000 = vmul.f32 %v831, %v999
        %v1001 = vmul.f32 %v989, 1.442695
        %v1002 = vpow.pop %v1001
        %v1003 = vmul.f32 %v990, 1.442695
        %v1004 = vpow.pop %v1003
        %v1005 = vmul.f32 %v991, 1.442695
        %v1006 = vpow.pop %v1005
        %v1007 = vmul.f32 %v992, 1.442695
        %v1008 = vpow.pop %v1007
        %v1009 = vmul.f32 %v993, 1.442695
        %v1010 = vpow.pop %v1009
        %v1011 = vmul.f32 %v994, 1.442695
        %v1012 = vpow.pop %v1011
        %v1013 = vmul.f32 %v995, 1.442695
        %v1014 = vpow.pop %v1013
        %v1015 = vmul.f32 %v996, 1.442695
        %v1016 = vpow.pop %v1015
        %v1017 = vadd.f32 %v1002, %v1004
        %v1018 = vadd.f32 %v1017, %v1006
        %v1019 = vadd.f32 %v1018, %v1008
        %v1020 = vadd.f32 %v1019, %v1010
        %v1021 = vadd.f32 %v1020, %v1012
        %v1022 = vadd.f32 %v1021, %v1014
        %v1023 = vadd.f32 %v1022, %v1016
        %v1024 = vrot.slane %v1023, 4
        %v1025 = vadd.f32 %v1023, %v1024
        %v1026 = vrot.slane %v1025, 2
        %v1027 = vadd.f32 %v1025, %v1026
        %v1028 = vrot.slane %v1027, 1
        %v1029 = vadd.f32 %v1027, %v1028
        %v1030 = vadd.f32 %v1000, %v1029
        %vm1031 = vcmp.ge.f32.partialorder %v989, 0.0
        %vm1032 = vcmp.ge.f32.partialorder %v990, 0.0
        %vm1033 = vcmp.ge.f32.partialorder %v991, 0.0
        %vm1034 = vcmp.ge.f32.partialorder %v992, 0.0
        %vm1035 = vcmp.ge.f32.partialorder %v993, 0.0
        %vm1036 = vcmp.ge.f32.partialorder %v994, 0.0
        %vm1037 = vcmp.ge.f32.partialorder %v995, 0.0
        %vm1038 = vcmp.ge.f32.partialorder %v996, 0.0
        %v1039 = vsel %vm1031, %v239, 64
        %v1040 = vsel %vm1032, %v240, 64
        %v1041 = vsel %vm1033, %v241, 64
        %v1042 = vsel %vm1034, %v242, 64
        %v1043 = vsel %vm1035, %v243, 64
        %v1044 = vsel %vm1036, %v244, 64
        %v1045 = vsel %vm1037, %v245, 64
        %v1046 = vsel %vm1038, %v246, 64
        %vm1047 = vcmp.lt.s32.totalorder %v1039, %v1043
        %v1048 = vsel %vm1047, %v1039, %v1043
        %vm1049 = vcmp.lt.s32.totalorder %v1040, %v1044
        %v1050 = vsel %vm1049, %v1040, %v1044
        %vm1051 = vcmp.lt.s32.totalorder %v1041, %v1045
        %v1052 = vsel %vm1051, %v1041, %v1045
        %vm1053 = vcmp.lt.s32.totalorder %v1042, %v1046
        %v1054 = vsel %vm1053, %v1042, %v1046
        %vm1055 = vcmp.lt.s32.totalorder %v1048, %v1050
        %v1056 = vsel %vm1055, %v1048, %v1050
        %vm1057 = vcmp.lt.s32.totalorder %v1052, %v1054
        %v1058 = vsel %vm1057, %v1052, %v1054
        %vm1059 = vcmp.lt.s32.totalorder %v1056, %v1058
        %v1060 = vsel %vm1059, %v1056, %v1058
        %v1061 = vrot.slane %v1060, 4
        %vm1062 = vcmp.lt.s32.totalorder %v1060, %v1061
        %v1063 = vsel %vm1062, %v1060, %v1061
        %v1064 = vrot.slane %v1063, 2
        %vm1065 = vcmp.lt.s32.totalorder %v1063, %v1064
        %v1066 = vsel %vm1065, %v1063, %v1064
        %v1067 = vrot.slane %v1066, 1
        %vm1068 = vcmp.lt.s32.totalorder %v1066, %v1067
        %v1069 = vsel %vm1068, %v1066, %v1067
        %vm1070 = vcmp.gt.f32.partialorder %v987, %v789
        %v1071 = vadd.s32 %v1069, 192
        %v1072 = vsel %vm1070, %v1071, %v873
        %v1073 = vsub.s32 %v237, 192
        %v1074 = vperm.slane %v1073, 0
        %vm1075 = vcmp.eq.s32.totalorder %v239, %v1074
        %vm1076 = vcmp.eq.s32.totalorder %v240, %v1074
        %vm1077 = vcmp.eq.s32.totalorder %v241, %v1074
        %vm1078 = vcmp.eq.s32.totalorder %v242, %v1074
        %vm1079 = vcmp.eq.s32.totalorder %v243, %v1074
        %vm1080 = vcmp.eq.s32.totalorder %v244, %v1074
        %vm1081 = vcmp.eq.s32.totalorder %v245, %v1074
        %vm1082 = vcmp.eq.s32.totalorder %v246, %v1074
        %v1083 = vsel %vm1075, %v956, 0.0
        %v1084 = vsel %vm1076, %v958, 0.0
        %v1085 = vsel %vm1077, %v961, 0.0
        %v1086 = vsel %vm1078, %v963, 0.0
        %v1087 = vsel %vm1079, %v966, 0.0
        %v1088 = vsel %vm1080, %v968, 0.0
        %v1089 = vsel %vm1081, %v971, 0.0
        %v1090 = vsel %vm1082, %v973, 0.0
        %v1091 = vadd.f32 %v1083, %v1084
        %v1092 = vadd.f32 %v1091, %v1085
        %v1093 = vadd.f32 %v1092, %v1086
        %v1094 = vadd.f32 %v1093, %v1087
        %v1095 = vadd.f32 %v1094, %v1088
        %v1096 = vadd.f32 %v1095, %v1089
        %v1097 = vadd.f32 %v1096, %v1090
        %v1098 = vrot.slane %v1097, 4
        %v1099 = vadd.f32 %v1097, %v1098
        %v1100 = vrot.slane %v1099, 2
        %v1101 = vadd.f32 %v1099, %v1100
        %v1102 = vrot.slane %v1101, 1
        %v1103 = vadd.f32 %v1101, %v1102
        %v1104 = vadd.f32 %v905, %v1103
        %v1105 = vld [vmem:[%s2 + $0x80] sm:$0xf]
        %v1106 = vld [vmem:[%s2 + $0x84] sm:$0xf]
        %v1107 = vld [vmem:[%s2 + $0x88] sm:$0xf]
        %v1108 = vld [vmem:[%s2 + $0x8c] sm:$0xf]
        %v1109 = vld [vmem:[%s2 + $0x90] sm:$0xf]
        %v1110 = vld [vmem:[%s2 + $0x94] sm:$0xf]
        %v1111 = vld [vmem:[%s2 + $0x98] sm:$0xf]
        %v1112 = vld [vmem:[%s2 + $0x9c] sm:$0xf]
        %v1121 = vunpack.c.l.b16 %v1105
        %v1122 = vunpack.c.l.b16 %v1106
        %v1123 = vunpack.c.l.b16 %v1107
        %v1124 = vunpack.c.l.b16 %v1108
        %v1125 = vunpack.c.l.b16 %v1109
        %v1126 = vunpack.c.l.b16 %v1110
        %v1127 = vunpack.c.l.b16 %v1111
        %v1128 = vunpack.c.l.b16 %v1112
        %v1129 = vpack.c.b16 %v1122, %v1121
        %v1130 = vpack.c.b16 %v1124, %v1123
        %v1131 = vpack.c.b16 %v1126, %v1125
        %v1132 = vpack.c.b16 %v1128, %v1127
        %v1134 = vsel %vm315, %v1129, 0
        %v1137 = vsel %vm315, %v1130, 0
        %v1140 = vsel %vm315, %v1131, 0
        %v1143 = vsel %vm315, %v1132, 0
        %1145 = vmatpush.bf16.xpose.msra.mxu0 %v350
        %1146 = vmatpush.bf16.xpose.msra.mxu0 %v347
        %1147 = vmatpush.bf16.xpose.msra.mxu0 %v344
        %1148 = vmatpush.bf16.xpose.msra.mxu0 %v341
        %1149 = vmatpush.bf16.xpose.msra.mxu0 %v338
        %1150 = vmatpush.bf16.xpose.msra.mxu0 %v335
        %1151 = vmatpush.bf16.xpose.msra.mxu0 %v332
        %1152 = vmatpush.bf16.xpose.msra.mxu0 %v329
        %1153 = vmatmul.bf16.gmra.mxu0 %v1134
        %v1154 = vpop.f32.mrf.mxu0
        %v1155 = vadd.f32 0.0, %v1154
        %v1156 = vpop.f32.mrf.mxu0
        %v1157 = vadd.f32 0.0, %v1156
        %1158 = vmatmul.bf16.gmra.mxu0 %v1137
        %v1159 = vpop.f32.mrf.mxu0
        %v1160 = vadd.f32 0.0, %v1159
        %v1161 = vpop.f32.mrf.mxu0
        %v1162 = vadd.f32 0.0, %v1161
        %1163 = vmatmul.bf16.gmra.mxu0 %v1140
        %v1164 = vpop.f32.mrf.mxu0
        %v1165 = vadd.f32 0.0, %v1164
        %v1166 = vpop.f32.mrf.mxu0
        %v1167 = vadd.f32 0.0, %v1166
        %1168 = vmatmul.bf16.gmra.mxu0 %v1143
        %v1169 = vpop.f32.mrf.mxu0
        %v1170 = vadd.f32 0.0, %v1169
        %v1171 = vpop.f32.mrf.mxu0
        %v1172 = vadd.f32 0.0, %v1171
        %1173 = vdwg.mxu0
        %v1174 = vmax.f32 %v1155, %v1165
        %v1175 = vmax.f32 %v1157, %v1167
        %v1176 = vmax.f32 %v1160, %v1170
        %v1177 = vmax.f32 %v1162, %v1172
        %v1178 = vmax.f32 %v1174, %v1175
        %v1179 = vmax.f32 %v1176, %v1177
        %v1180 = vmax.f32 %v1178, %v1179
        %v1181 = vrot.slane %v1180, 4
        %v1182 = vmax.f32 %v1180, %v1181
        %v1183 = vrot.slane %v1182, 2
        %v1184 = vmax.f32 %v1182, %v1183
        %v1185 = vrot.slane %v1184, 1
        %v1186 = vmax.f32 %v1184, %v1185
        %v1187 = vmax.f32 %v988, %v1186
        %v1188 = vsub.f32 %v1155, %v1187
        %v1189 = vsub.f32 %v1157, %v1187
        %v1190 = vsub.f32 %v1160, %v1187
        %v1191 = vsub.f32 %v1162, %v1187
        %v1192 = vsub.f32 %v1165, %v1187
        %v1193 = vsub.f32 %v1167, %v1187
        %v1194 = vsub.f32 %v1170, %v1187
        %v1195 = vsub.f32 %v1172, %v1187
        %v1196 = vsub.f32 %v988, %v1187
        %v1197 = vmul.f32 %v1196, 1.442695
        %v1198 = vpow.pop %v1197
        %v1199 = vmul.f32 %v1030, %v1198
        %v1200 = vmul.f32 %v1188, 1.442695
        %v1201 = vpow.pop %v1200
        %v1202 = vmul.f32 %v1189, 1.442695
        %v1203 = vpow.pop %v1202
        %v1204 = vmul.f32 %v1190, 1.442695
        %v1205 = vpow.pop %v1204
        %v1206 = vmul.f32 %v1191, 1.442695
        %v1207 = vpow.pop %v1206
        %v1208 = vmul.f32 %v1192, 1.442695
        %v1209 = vpow.pop %v1208
        %v1210 = vmul.f32 %v1193, 1.442695
        %v1211 = vpow.pop %v1210
        %v1212 = vmul.f32 %v1194, 1.442695
        %v1213 = vpow.pop %v1212
        %v1214 = vmul.f32 %v1195, 1.442695
        %v1215 = vpow.pop %v1214
        %v1216 = vadd.f32 %v1201, %v1203
        %v1217 = vadd.f32 %v1216, %v1205
        %v1218 = vadd.f32 %v1217, %v1207
        %v1219 = vadd.f32 %v1218, %v1209
        %v1220 = vadd.f32 %v1219, %v1211
        %v1221 = vadd.f32 %v1220, %v1213
        %v1222 = vadd.f32 %v1221, %v1215
        %v1223 = vrot.slane %v1222, 4
        %v1224 = vadd.f32 %v1222, %v1223
        %v1225 = vrot.slane %v1224, 2
        %v1226 = vadd.f32 %v1224, %v1225
        %v1227 = vrot.slane %v1226, 1
        %v1228 = vadd.f32 %v1226, %v1227
        %v1229 = vadd.f32 %v1199, %v1228
        %vm1230 = vcmp.ge.f32.partialorder %v1188, 0.0
        %vm1231 = vcmp.ge.f32.partialorder %v1189, 0.0
        %vm1232 = vcmp.ge.f32.partialorder %v1190, 0.0
        %vm1233 = vcmp.ge.f32.partialorder %v1191, 0.0
        %vm1234 = vcmp.ge.f32.partialorder %v1192, 0.0
        %vm1235 = vcmp.ge.f32.partialorder %v1193, 0.0
        %vm1236 = vcmp.ge.f32.partialorder %v1194, 0.0
        %vm1237 = vcmp.ge.f32.partialorder %v1195, 0.0
        %v1238 = vsel %vm1230, %v239, 64
        %v1239 = vsel %vm1231, %v240, 64
        %v1240 = vsel %vm1232, %v241, 64
        %v1241 = vsel %vm1233, %v242, 64
        %v1242 = vsel %vm1234, %v243, 64
        %v1243 = vsel %vm1235, %v244, 64
        %v1244 = vsel %vm1236, %v245, 64
        %v1245 = vsel %vm1237, %v246, 64
        %vm1246 = vcmp.lt.s32.totalorder %v1238, %v1242
        %v1247 = vsel %vm1246, %v1238, %v1242
        %vm1248 = vcmp.lt.s32.totalorder %v1239, %v1243
        %v1249 = vsel %vm1248, %v1239, %v1243
        %vm1250 = vcmp.lt.s32.totalorder %v1240, %v1244
        %v1251 = vsel %vm1250, %v1240, %v1244
        %vm1252 = vcmp.lt.s32.totalorder %v1241, %v1245
        %v1253 = vsel %vm1252, %v1241, %v1245
        %vm1254 = vcmp.lt.s32.totalorder %v1247, %v1249
        %v1255 = vsel %vm1254, %v1247, %v1249
        %vm1256 = vcmp.lt.s32.totalorder %v1251, %v1253
        %v1257 = vsel %vm1256, %v1251, %v1253
        %vm1258 = vcmp.lt.s32.totalorder %v1255, %v1257
        %v1259 = vsel %vm1258, %v1255, %v1257
        %v1260 = vrot.slane %v1259, 4
        %vm1261 = vcmp.lt.s32.totalorder %v1259, %v1260
        %v1262 = vsel %vm1261, %v1259, %v1260
        %v1263 = vrot.slane %v1262, 2
        %vm1264 = vcmp.lt.s32.totalorder %v1262, %v1263
        %v1265 = vsel %vm1264, %v1262, %v1263
        %v1266 = vrot.slane %v1265, 1
        %vm1267 = vcmp.lt.s32.totalorder %v1265, %v1266
        %v1268 = vsel %vm1267, %v1265, %v1266
        %vm1269 = vcmp.gt.f32.partialorder %v1186, %v988
        %v1270 = vadd.s32 %v1268, 256
        %v1271 = vsel %vm1269, %v1270, %v1072
        %v1272 = vsub.s32 %v237, 256
        %v1273 = vperm.slane %v1272, 0
        %vm1274 = vcmp.eq.s32.totalorder %v239, %v1273
        %vm1275 = vcmp.eq.s32.totalorder %v240, %v1273
        %vm1276 = vcmp.eq.s32.totalorder %v241, %v1273
        %vm1277 = vcmp.eq.s32.totalorder %v242, %v1273
        %vm1278 = vcmp.eq.s32.totalorder %v243, %v1273
        %vm1279 = vcmp.eq.s32.totalorder %v244, %v1273
        %vm1280 = vcmp.eq.s32.totalorder %v245, %v1273
        %vm1281 = vcmp.eq.s32.totalorder %v246, %v1273
        %v1282 = vsel %vm1274, %v1155, 0.0
        %v1283 = vsel %vm1275, %v1157, 0.0
        %v1284 = vsel %vm1276, %v1160, 0.0
        %v1285 = vsel %vm1277, %v1162, 0.0
        %v1286 = vsel %vm1278, %v1165, 0.0
        %v1287 = vsel %vm1279, %v1167, 0.0
        %v1288 = vsel %vm1280, %v1170, 0.0
        %v1289 = vsel %vm1281, %v1172, 0.0
        %v1290 = vadd.f32 %v1282, %v1283
        %v1291 = vadd.f32 %v1290, %v1284
        %v1292 = vadd.f32 %v1291, %v1285
        %v1293 = vadd.f32 %v1292, %v1286
        %v1294 = vadd.f32 %v1293, %v1287
        %v1295 = vadd.f32 %v1294, %v1288
        %v1296 = vadd.f32 %v1295, %v1289
        %v1297 = vrot.slane %v1296, 4
        %v1298 = vadd.f32 %v1296, %v1297
        %v1299 = vrot.slane %v1298, 2
        %v1300 = vadd.f32 %v1298, %v1299
        %v1301 = vrot.slane %v1300, 1
        %v1302 = vadd.f32 %v1300, %v1301
        %v1303 = vadd.f32 %v1104, %v1302
        %v1304 = vld [vmem:[%s2 + $0xa0] sm:$0xf]
        %v1305 = vld [vmem:[%s2 + $0xa4] sm:$0xf]
        %v1306 = vld [vmem:[%s2 + $0xa8] sm:$0xf]
        %v1307 = vld [vmem:[%s2 + $0xac] sm:$0xf]
        %v1308 = vld [vmem:[%s2 + $0xb0] sm:$0xf]
        %v1309 = vld [vmem:[%s2 + $0xb4] sm:$0xf]
        %v1310 = vld [vmem:[%s2 + $0xb8] sm:$0xf]
        %v1311 = vld [vmem:[%s2 + $0xbc] sm:$0xf]
        %v1320 = vunpack.c.l.b16 %v1304
        %v1321 = vunpack.c.l.b16 %v1305
        %v1322 = vunpack.c.l.b16 %v1306
        %v1323 = vunpack.c.l.b16 %v1307
        %v1324 = vunpack.c.l.b16 %v1308
        %v1325 = vunpack.c.l.b16 %v1309
        %v1326 = vunpack.c.l.b16 %v1310
        %v1327 = vunpack.c.l.b16 %v1311
        %v1328 = vpack.c.b16 %v1321, %v1320
        %v1329 = vpack.c.b16 %v1323, %v1322
        %v1330 = vpack.c.b16 %v1325, %v1324
        %v1331 = vpack.c.b16 %v1327, %v1326
        %v1333 = vsel %vm315, %v1328, 0
        %v1336 = vsel %vm315, %v1329, 0
        %v1339 = vsel %vm315, %v1330, 0
        %v1342 = vsel %vm315, %v1331, 0
        %1344 = vmatpush.bf16.xpose.msra.mxu0 %v350
        %1345 = vmatpush.bf16.xpose.msra.mxu0 %v347
        %1346 = vmatpush.bf16.xpose.msra.mxu0 %v344
        %1347 = vmatpush.bf16.xpose.msra.mxu0 %v341
        %1348 = vmatpush.bf16.xpose.msra.mxu0 %v338
        %1349 = vmatpush.bf16.xpose.msra.mxu0 %v335
        %1350 = vmatpush.bf16.xpose.msra.mxu0 %v332
        %1351 = vmatpush.bf16.xpose.msra.mxu0 %v329
        %1352 = vmatmul.bf16.gmra.mxu0 %v1333
        %v1353 = vpop.f32.mrf.mxu0
        %v1354 = vadd.f32 0.0, %v1353
        %v1355 = vpop.f32.mrf.mxu0
        %v1356 = vadd.f32 0.0, %v1355
        %1357 = vmatmul.bf16.gmra.mxu0 %v1336
        %v1358 = vpop.f32.mrf.mxu0
        %v1359 = vadd.f32 0.0, %v1358
        %v1360 = vpop.f32.mrf.mxu0
        %v1361 = vadd.f32 0.0, %v1360
        %1362 = vmatmul.bf16.gmra.mxu0 %v1339
        %v1363 = vpop.f32.mrf.mxu0
        %v1364 = vadd.f32 0.0, %v1363
        %v1365 = vpop.f32.mrf.mxu0
        %v1366 = vadd.f32 0.0, %v1365
        %1367 = vmatmul.bf16.gmra.mxu0 %v1342
        %v1368 = vpop.f32.mrf.mxu0
        %v1369 = vadd.f32 0.0, %v1368
        %v1370 = vpop.f32.mrf.mxu0
        %v1371 = vadd.f32 0.0, %v1370
        %1372 = vdwg.mxu0
        %v1373 = vmax.f32 %v1354, %v1364
        %v1374 = vmax.f32 %v1356, %v1366
        %v1375 = vmax.f32 %v1359, %v1369
        %v1376 = vmax.f32 %v1361, %v1371
        %v1377 = vmax.f32 %v1373, %v1374
        %v1378 = vmax.f32 %v1375, %v1376
        %v1379 = vmax.f32 %v1377, %v1378
        %v1380 = vrot.slane %v1379, 4
        %v1381 = vmax.f32 %v1379, %v1380
        %v1382 = vrot.slane %v1381, 2
        %v1383 = vmax.f32 %v1381, %v1382
        %v1384 = vrot.slane %v1383, 1
        %v1385 = vmax.f32 %v1383, %v1384
        %v1386 = vmax.f32 %v1187, %v1385
        %v1387 = vsub.f32 %v1354, %v1386
        %v1388 = vsub.f32 %v1356, %v1386
        %v1389 = vsub.f32 %v1359, %v1386
        %v1390 = vsub.f32 %v1361, %v1386
        %v1391 = vsub.f32 %v1364, %v1386
        %v1392 = vsub.f32 %v1366, %v1386
        %v1393 = vsub.f32 %v1369, %v1386
        %v1394 = vsub.f32 %v1371, %v1386
        %v1395 = vsub.f32 %v1187, %v1386
        %v1396 = vmul.f32 %v1395, 1.442695
        %v1397 = vpow.pop %v1396
        %v1398 = vmul.f32 %v1229, %v1397
        %v1399 = vmul.f32 %v1387, 1.442695
        %v1400 = vpow.pop %v1399
        %v1401 = vmul.f32 %v1388, 1.442695
        %v1402 = vpow.pop %v1401
        %v1403 = vmul.f32 %v1389, 1.442695
        %v1404 = vpow.pop %v1403
        %v1405 = vmul.f32 %v1390, 1.442695
        %v1406 = vpow.pop %v1405
        %v1407 = vmul.f32 %v1391, 1.442695
        %v1408 = vpow.pop %v1407
        %v1409 = vmul.f32 %v1392, 1.442695
        %v1410 = vpow.pop %v1409
        %v1411 = vmul.f32 %v1393, 1.442695
        %v1412 = vpow.pop %v1411
        %v1413 = vmul.f32 %v1394, 1.442695
        %v1414 = vpow.pop %v1413
        %v1415 = vadd.f32 %v1400, %v1402
        %v1416 = vadd.f32 %v1415, %v1404
        %v1417 = vadd.f32 %v1416, %v1406
        %v1418 = vadd.f32 %v1417, %v1408
        %v1419 = vadd.f32 %v1418, %v1410
        %v1420 = vadd.f32 %v1419, %v1412
        %v1421 = vadd.f32 %v1420, %v1414
        %v1422 = vrot.slane %v1421, 4
        %v1423 = vadd.f32 %v1421, %v1422
        %v1424 = vrot.slane %v1423, 2
        %v1425 = vadd.f32 %v1423, %v1424
        %v1426 = vrot.slane %v1425, 1
        %v1427 = vadd.f32 %v1425, %v1426
        %v1428 = vadd.f32 %v1398, %v1427
        %vm1429 = vcmp.ge.f32.partialorder %v1387, 0.0
        %vm1430 = vcmp.ge.f32.partialorder %v1388, 0.0
        %vm1431 = vcmp.ge.f32.partialorder %v1389, 0.0
        %vm1432 = vcmp.ge.f32.partialorder %v1390, 0.0
        %vm1433 = vcmp.ge.f32.partialorder %v1391, 0.0
        %vm1434 = vcmp.ge.f32.partialorder %v1392, 0.0
        %vm1435 = vcmp.ge.f32.partialorder %v1393, 0.0
        %vm1436 = vcmp.ge.f32.partialorder %v1394, 0.0
        %v1437 = vsel %vm1429, %v239, 64
        %v1438 = vsel %vm1430, %v240, 64
        %v1439 = vsel %vm1431, %v241, 64
        %v1440 = vsel %vm1432, %v242, 64
        %v1441 = vsel %vm1433, %v243, 64
        %v1442 = vsel %vm1434, %v244, 64
        %v1443 = vsel %vm1435, %v245, 64
        %v1444 = vsel %vm1436, %v246, 64
        %vm1445 = vcmp.lt.s32.totalorder %v1437, %v1441
        %v1446 = vsel %vm1445, %v1437, %v1441
        %vm1447 = vcmp.lt.s32.totalorder %v1438, %v1442
        %v1448 = vsel %vm1447, %v1438, %v1442
        %vm1449 = vcmp.lt.s32.totalorder %v1439, %v1443
        %v1450 = vsel %vm1449, %v1439, %v1443
        %vm1451 = vcmp.lt.s32.totalorder %v1440, %v1444
        %v1452 = vsel %vm1451, %v1440, %v1444
        %vm1453 = vcmp.lt.s32.totalorder %v1446, %v1448
        %v1454 = vsel %vm1453, %v1446, %v1448
        %vm1455 = vcmp.lt.s32.totalorder %v1450, %v1452
        %v1456 = vsel %vm1455, %v1450, %v1452
        %vm1457 = vcmp.lt.s32.totalorder %v1454, %v1456
        %v1458 = vsel %vm1457, %v1454, %v1456
        %v1459 = vrot.slane %v1458, 4
        %vm1460 = vcmp.lt.s32.totalorder %v1458, %v1459
        %v1461 = vsel %vm1460, %v1458, %v1459
        %v1462 = vrot.slane %v1461, 2
        %vm1463 = vcmp.lt.s32.totalorder %v1461, %v1462
        %v1464 = vsel %vm1463, %v1461, %v1462
        %v1465 = vrot.slane %v1464, 1
        %vm1466 = vcmp.lt.s32.totalorder %v1464, %v1465
        %v1467 = vsel %vm1466, %v1464, %v1465
        %vm1468 = vcmp.gt.f32.partialorder %v1385, %v1187
        %v1469 = vadd.s32 %v1467, 320
        %v1470 = vsel %vm1468, %v1469, %v1271
        %v1471 = vsub.s32 %v237, 320
        %v1472 = vperm.slane %v1471, 0
        %vm1473 = vcmp.eq.s32.totalorder %v239, %v1472
        %vm1474 = vcmp.eq.s32.totalorder %v240, %v1472
        %vm1475 = vcmp.eq.s32.totalorder %v241, %v1472
        %vm1476 = vcmp.eq.s32.totalorder %v242, %v1472
        %vm1477 = vcmp.eq.s32.totalorder %v243, %v1472
        %vm1478 = vcmp.eq.s32.totalorder %v244, %v1472
        %vm1479 = vcmp.eq.s32.totalorder %v245, %v1472
        %vm1480 = vcmp.eq.s32.totalorder %v246, %v1472
        %v1481 = vsel %vm1473, %v1354, 0.0
        %v1482 = vsel %vm1474, %v1356, 0.0
        %v1483 = vsel %vm1475, %v1359, 0.0
        %v1484 = vsel %vm1476, %v1361, 0.0
        %v1485 = vsel %vm1477, %v1364, 0.0
        %v1486 = vsel %vm1478, %v1366, 0.0
        %v1487 = vsel %vm1479, %v1369, 0.0
        %v1488 = vsel %vm1480, %v1371, 0.0
        %v1489 = vadd.f32 %v1481, %v1482
        %v1490 = vadd.f32 %v1489, %v1483
        %v1491 = vadd.f32 %v1490, %v1484
        %v1492 = vadd.f32 %v1491, %v1485
        %v1493 = vadd.f32 %v1492, %v1486
        %v1494 = vadd.f32 %v1493, %v1487
        %v1495 = vadd.f32 %v1494, %v1488
        %v1496 = vrot.slane %v1495, 4
        %v1497 = vadd.f32 %v1495, %v1496
        %v1498 = vrot.slane %v1497, 2
        %v1499 = vadd.f32 %v1497, %v1498
        %v1500 = vrot.slane %v1499, 1
        %v1501 = vadd.f32 %v1499, %v1500
        %v1502 = vadd.f32 %v1303, %v1501
        %v1503 = vld [vmem:[%s2 + $0xc0] sm:$0xf]
        %v1504 = vld [vmem:[%s2 + $0xc4] sm:$0xf]
        %v1505 = vld [vmem:[%s2 + $0xc8] sm:$0xf]
        %v1506 = vld [vmem:[%s2 + $0xcc] sm:$0xf]
        %v1507 = vld [vmem:[%s2 + $0xd0] sm:$0xf]
        %v1508 = vld [vmem:[%s2 + $0xd4] sm:$0xf]
        %v1509 = vld [vmem:[%s2 + $0xd8] sm:$0xf]
        %v1510 = vld [vmem:[%s2 + $0xdc] sm:$0xf]
        %v1519 = vunpack.c.l.b16 %v1503
        %v1520 = vunpack.c.l.b16 %v1504
        %v1521 = vunpack.c.l.b16 %v1505
        %v1522 = vunpack.c.l.b16 %v1506
        %v1523 = vunpack.c.l.b16 %v1507
        %v1524 = vunpack.c.l.b16 %v1508
        %v1525 = vunpack.c.l.b16 %v1509
        %v1526 = vunpack.c.l.b16 %v1510
        %v1527 = vpack.c.b16 %v1520, %v1519
        %v1528 = vpack.c.b16 %v1522, %v1521
        %v1529 = vpack.c.b16 %v1524, %v1523
        %v1530 = vpack.c.b16 %v1526, %v1525
        %v1532 = vsel %vm315, %v1527, 0
        %v1535 = vsel %vm315, %v1528, 0
        %v1538 = vsel %vm315, %v1529, 0
        %v1541 = vsel %vm315, %v1530, 0
        %1543 = vmatpush.bf16.xpose.msra.mxu0 %v350
        %1544 = vmatpush.bf16.xpose.msra.mxu0 %v347
        %1545 = vmatpush.bf16.xpose.msra.mxu0 %v344
        %1546 = vmatpush.bf16.xpose.msra.mxu0 %v341
        %1547 = vmatpush.bf16.xpose.msra.mxu0 %v338
        %1548 = vmatpush.bf16.xpose.msra.mxu0 %v335
        %1549 = vmatpush.bf16.xpose.msra.mxu0 %v332
        %1550 = vmatpush.bf16.xpose.msra.mxu0 %v329
        %1551 = vmatmul.bf16.gmra.mxu0 %v1532
        %v1552 = vpop.f32.mrf.mxu0
        %v1553 = vadd.f32 0.0, %v1552
        %v1554 = vpop.f32.mrf.mxu0
        %v1555 = vadd.f32 0.0, %v1554
        %1556 = vmatmul.bf16.gmra.mxu0 %v1535
        %v1557 = vpop.f32.mrf.mxu0
        %v1558 = vadd.f32 0.0, %v1557
        %v1559 = vpop.f32.mrf.mxu0
        %v1560 = vadd.f32 0.0, %v1559
        %1561 = vmatmul.bf16.gmra.mxu0 %v1538
        %v1562 = vpop.f32.mrf.mxu0
        %v1563 = vadd.f32 0.0, %v1562
        %v1564 = vpop.f32.mrf.mxu0
        %v1565 = vadd.f32 0.0, %v1564
        %1566 = vmatmul.bf16.gmra.mxu0 %v1541
        %v1567 = vpop.f32.mrf.mxu0
        %v1568 = vadd.f32 0.0, %v1567
        %v1569 = vpop.f32.mrf.mxu0
        %v1570 = vadd.f32 0.0, %v1569
        %1571 = vdwg.mxu0
        %v1572 = vmax.f32 %v1553, %v1563
        %v1573 = vmax.f32 %v1555, %v1565
        %v1574 = vmax.f32 %v1558, %v1568
        %v1575 = vmax.f32 %v1560, %v1570
        %v1576 = vmax.f32 %v1572, %v1573
        %v1577 = vmax.f32 %v1574, %v1575
        %v1578 = vmax.f32 %v1576, %v1577
        %v1579 = vrot.slane %v1578, 4
        %v1580 = vmax.f32 %v1578, %v1579
        %v1581 = vrot.slane %v1580, 2
        %v1582 = vmax.f32 %v1580, %v1581
        %v1583 = vrot.slane %v1582, 1
        %v1584 = vmax.f32 %v1582, %v1583
        %v1585 = vmax.f32 %v1386, %v1584
        %v1586 = vsub.f32 %v1553, %v1585
        %v1587 = vsub.f32 %v1555, %v1585
        %v1588 = vsub.f32 %v1558, %v1585
        %v1589 = vsub.f32 %v1560, %v1585
        %v1590 = vsub.f32 %v1563, %v1585
        %v1591 = vsub.f32 %v1565, %v1585
        %v1592 = vsub.f32 %v1568, %v1585
        %v1593 = vsub.f32 %v1570, %v1585
        %v1594 = vsub.f32 %v1386, %v1585
        %v1595 = vmul.f32 %v1594, 1.442695
        %v1596 = vpow.pop %v1595
        %v1597 = vmul.f32 %v1428, %v1596
        %v1598 = vmul.f32 %v1586, 1.442695
        %v1599 = vpow.pop %v1598
        %v1600 = vmul.f32 %v1587, 1.442695
        %v1601 = vpow.pop %v1600
        %v1602 = vmul.f32 %v1588, 1.442695
        %v1603 = vpow.pop %v1602
        %v1604 = vmul.f32 %v1589, 1.442695
        %v1605 = vpow.pop %v1604
        %v1606 = vmul.f32 %v1590, 1.442695
        %v1607 = vpow.pop %v1606
        %v1608 = vmul.f32 %v1591, 1.442695
        %v1609 = vpow.pop %v1608
        %v1610 = vmul.f32 %v1592, 1.442695
        %v1611 = vpow.pop %v1610
        %v1612 = vmul.f32 %v1593, 1.442695
        %v1613 = vpow.pop %v1612
        %v1614 = vadd.f32 %v1599, %v1601
        %v1615 = vadd.f32 %v1614, %v1603
        %v1616 = vadd.f32 %v1615, %v1605
        %v1617 = vadd.f32 %v1616, %v1607
        %v1618 = vadd.f32 %v1617, %v1609
        %v1619 = vadd.f32 %v1618, %v1611
        %v1620 = vadd.f32 %v1619, %v1613
        %v1621 = vrot.slane %v1620, 4
        %v1622 = vadd.f32 %v1620, %v1621
        %v1623 = vrot.slane %v1622, 2
        %v1624 = vadd.f32 %v1622, %v1623
        %v1625 = vrot.slane %v1624, 1
        %v1626 = vadd.f32 %v1624, %v1625
        %v1627 = vadd.f32 %v1597, %v1626
        %vm1628 = vcmp.ge.f32.partialorder %v1586, 0.0
        %vm1629 = vcmp.ge.f32.partialorder %v1587, 0.0
        %vm1630 = vcmp.ge.f32.partialorder %v1588, 0.0
        %vm1631 = vcmp.ge.f32.partialorder %v1589, 0.0
        %vm1632 = vcmp.ge.f32.partialorder %v1590, 0.0
        %vm1633 = vcmp.ge.f32.partialorder %v1591, 0.0
        %vm1634 = vcmp.ge.f32.partialorder %v1592, 0.0
        %vm1635 = vcmp.ge.f32.partialorder %v1593, 0.0
        %v1636 = vsel %vm1628, %v239, 64
        %v1637 = vsel %vm1629, %v240, 64
        %v1638 = vsel %vm1630, %v241, 64
        %v1639 = vsel %vm1631, %v242, 64
        %v1640 = vsel %vm1632, %v243, 64
        %v1641 = vsel %vm1633, %v244, 64
        %v1642 = vsel %vm1634, %v245, 64
        %v1643 = vsel %vm1635, %v246, 64
        %vm1644 = vcmp.lt.s32.totalorder %v1636, %v1640
        %v1645 = vsel %vm1644, %v1636, %v1640
        %vm1646 = vcmp.lt.s32.totalorder %v1637, %v1641
        %v1647 = vsel %vm1646, %v1637, %v1641
        %vm1648 = vcmp.lt.s32.totalorder %v1638, %v1642
        %v1649 = vsel %vm1648, %v1638, %v1642
        %vm1650 = vcmp.lt.s32.totalorder %v1639, %v1643
        %v1651 = vsel %vm1650, %v1639, %v1643
        %vm1652 = vcmp.lt.s32.totalorder %v1645, %v1647
        %v1653 = vsel %vm1652, %v1645, %v1647
        %vm1654 = vcmp.lt.s32.totalorder %v1649, %v1651
        %v1655 = vsel %vm1654, %v1649, %v1651
        %vm1656 = vcmp.lt.s32.totalorder %v1653, %v1655
        %v1657 = vsel %vm1656, %v1653, %v1655
        %v1658 = vrot.slane %v1657, 4
        %vm1659 = vcmp.lt.s32.totalorder %v1657, %v1658
        %v1660 = vsel %vm1659, %v1657, %v1658
        %v1661 = vrot.slane %v1660, 2
        %vm1662 = vcmp.lt.s32.totalorder %v1660, %v1661
        %v1663 = vsel %vm1662, %v1660, %v1661
        %v1664 = vrot.slane %v1663, 1
        %vm1665 = vcmp.lt.s32.totalorder %v1663, %v1664
        %v1666 = vsel %vm1665, %v1663, %v1664
        %vm1667 = vcmp.gt.f32.partialorder %v1584, %v1386
        %v1668 = vadd.s32 %v1666, 384
        %v1669 = vsel %vm1667, %v1668, %v1470
        %v1670 = vsub.s32 %v237, 384
        %v1671 = vperm.slane %v1670, 0
        %vm1672 = vcmp.eq.s32.totalorder %v239, %v1671
        %vm1673 = vcmp.eq.s32.totalorder %v240, %v1671
        %vm1674 = vcmp.eq.s32.totalorder %v241, %v1671
        %vm1675 = vcmp.eq.s32.totalorder %v242, %v1671
        %vm1676 = vcmp.eq.s32.totalorder %v243, %v1671
        %vm1677 = vcmp.eq.s32.totalorder %v244, %v1671
        %vm1678 = vcmp.eq.s32.totalorder %v245, %v1671
        %vm1679 = vcmp.eq.s32.totalorder %v246, %v1671
        %v1680 = vsel %vm1672, %v1553, 0.0
        %v1681 = vsel %vm1673, %v1555, 0.0
        %v1682 = vsel %vm1674, %v1558, 0.0
        %v1683 = vsel %vm1675, %v1560, 0.0
        %v1684 = vsel %vm1676, %v1563, 0.0
        %v1685 = vsel %vm1677, %v1565, 0.0
        %v1686 = vsel %vm1678, %v1568, 0.0
        %v1687 = vsel %vm1679, %v1570, 0.0
        %v1688 = vadd.f32 %v1680, %v1681
        %v1689 = vadd.f32 %v1688, %v1682
        %v1690 = vadd.f32 %v1689, %v1683
        %v1691 = vadd.f32 %v1690, %v1684
        %v1692 = vadd.f32 %v1691, %v1685
        %v1693 = vadd.f32 %v1692, %v1686
        %v1694 = vadd.f32 %v1693, %v1687
        %v1695 = vrot.slane %v1694, 4
        %v1696 = vadd.f32 %v1694, %v1695
        %v1697 = vrot.slane %v1696, 2
        %v1698 = vadd.f32 %v1696, %v1697
        %v1699 = vrot.slane %v1698, 1
        %v1700 = vadd.f32 %v1698, %v1699
        %v1701 = vadd.f32 %v1502, %v1700
        %v1702 = vld [vmem:[%s2 + $0xe0] sm:$0xf]
        %v1703 = vld [vmem:[%s2 + $0xe4] sm:$0xf]
        %v1704 = vld [vmem:[%s2 + $0xe8] sm:$0xf]
        %v1705 = vld [vmem:[%s2 + $0xec] sm:$0xf]
        %v1706 = vld [vmem:[%s2 + $0xf0] sm:$0xf]
        %v1707 = vld [vmem:[%s2 + $0xf4] sm:$0xf]
        %v1708 = vld [vmem:[%s2 + $0xf8] sm:$0xf]
        %v1709 = vld [vmem:[%s2 + $0xfc] sm:$0xf]
        %v1718 = vunpack.c.l.b16 %v1702
        %v1719 = vunpack.c.l.b16 %v1703
        %v1720 = vunpack.c.l.b16 %v1704
        %v1721 = vunpack.c.l.b16 %v1705
        %v1722 = vunpack.c.l.b16 %v1706
        %v1723 = vunpack.c.l.b16 %v1707
        %v1724 = vunpack.c.l.b16 %v1708
        %v1725 = vunpack.c.l.b16 %v1709
        %v1726 = vpack.c.b16 %v1719, %v1718
        %v1727 = vpack.c.b16 %v1721, %v1720
        %v1728 = vpack.c.b16 %v1723, %v1722
        %v1729 = vpack.c.b16 %v1725, %v1724
        %v1731 = vsel %vm315, %v1726, 0
        %v1734 = vsel %vm315, %v1727, 0
        %v1737 = vsel %vm315, %v1728, 0
        %v1740 = vsel %vm315, %v1729, 0
        %1742 = vmatpush.bf16.xpose.msra.mxu0 %v350
        %1743 = vmatpush.bf16.xpose.msra.mxu0 %v347
        %1744 = vmatpush.bf16.xpose.msra.mxu0 %v344
        %1745 = vmatpush.bf16.xpose.msra.mxu0 %v341
        %1746 = vmatpush.bf16.xpose.msra.mxu0 %v338
        %1747 = vmatpush.bf16.xpose.msra.mxu0 %v335
        %1748 = vmatpush.bf16.xpose.msra.mxu0 %v332
        %1749 = vmatpush.bf16.xpose.msra.mxu0 %v329
        %1750 = vmatmul.bf16.gmra.mxu0 %v1731
        %v1751 = vpop.f32.mrf.mxu0
        %v1752 = vadd.f32 0.0, %v1751
        %v1753 = vpop.f32.mrf.mxu0
        %v1754 = vadd.f32 0.0, %v1753
        %1755 = vmatmul.bf16.gmra.mxu0 %v1734
        %v1756 = vpop.f32.mrf.mxu0
        %v1757 = vadd.f32 0.0, %v1756
        %v1758 = vpop.f32.mrf.mxu0
        %v1759 = vadd.f32 0.0, %v1758
        %1760 = vmatmul.bf16.gmra.mxu0 %v1737
        %v1761 = vpop.f32.mrf.mxu0
        %v1762 = vadd.f32 0.0, %v1761
        %v1763 = vpop.f32.mrf.mxu0
        %v1764 = vadd.f32 0.0, %v1763
        %1765 = vmatmul.bf16.gmra.mxu0 %v1740
        %v1766 = vpop.f32.mrf.mxu0
        %v1767 = vadd.f32 0.0, %v1766
        %v1768 = vpop.f32.mrf.mxu0
        %v1769 = vadd.f32 0.0, %v1768
        %1770 = vdwg.mxu0
        %v1771 = vmax.f32 %v1752, %v1762
        %v1772 = vmax.f32 %v1754, %v1764
        %v1773 = vmax.f32 %v1757, %v1767
        %v1774 = vmax.f32 %v1759, %v1769
        %v1775 = vmax.f32 %v1771, %v1772
        %v1776 = vmax.f32 %v1773, %v1774
        %v1777 = vmax.f32 %v1775, %v1776
        %v1778 = vrot.slane %v1777, 4
        %v1779 = vmax.f32 %v1777, %v1778
        %v1780 = vrot.slane %v1779, 2
        %v1781 = vmax.f32 %v1779, %v1780
        %v1782 = vrot.slane %v1781, 1
        %v1783 = vmax.f32 %v1781, %v1782
        %v1784 = vmax.f32 %v1585, %v1783
        %v1785 = vsub.f32 %v1752, %v1784
        %v1786 = vsub.f32 %v1754, %v1784
        %v1787 = vsub.f32 %v1757, %v1784
        %v1788 = vsub.f32 %v1759, %v1784
        %v1789 = vsub.f32 %v1762, %v1784
        %v1790 = vsub.f32 %v1764, %v1784
        %v1791 = vsub.f32 %v1767, %v1784
        %v1792 = vsub.f32 %v1769, %v1784
        %v1793 = vsub.f32 %v1585, %v1784
        %v1794 = vmul.f32 %v1793, 1.442695
        %v1795 = vpow.pop %v1794
        %v1796 = vmul.f32 %v1627, %v1795
        %v1797 = vmul.f32 %v1785, 1.442695
        %v1798 = vpow.pop %v1797
        %v1799 = vmul.f32 %v1786, 1.442695
        %v1800 = vpow.pop %v1799
        %v1801 = vmul.f32 %v1787, 1.442695
        %v1802 = vpow.pop %v1801
        %v1803 = vmul.f32 %v1788, 1.442695
        %v1804 = vpow.pop %v1803
        %v1805 = vmul.f32 %v1789, 1.442695
        %v1806 = vpow.pop %v1805
        %v1807 = vmul.f32 %v1790, 1.442695
        %v1808 = vpow.pop %v1807
        %v1809 = vmul.f32 %v1791, 1.442695
        %v1810 = vpow.pop %v1809
        %v1811 = vmul.f32 %v1792, 1.442695
        %v1812 = vpow.pop %v1811
        %v1813 = vadd.f32 %v1798, %v1800
        %v1814 = vadd.f32 %v1813, %v1802
        %v1815 = vadd.f32 %v1814, %v1804
        %v1816 = vadd.f32 %v1815, %v1806
        %v1817 = vadd.f32 %v1816, %v1808
        %v1818 = vadd.f32 %v1817, %v1810
        %v1819 = vadd.f32 %v1818, %v1812
        %v1820 = vrot.slane %v1819, 4
        %v1821 = vadd.f32 %v1819, %v1820
        %v1822 = vrot.slane %v1821, 2
        %v1823 = vadd.f32 %v1821, %v1822
        %v1824 = vrot.slane %v1823, 1
        %v1825 = vadd.f32 %v1823, %v1824
        %v1826 = vadd.f32 %v1796, %v1825
        %vm1827 = vcmp.ge.f32.partialorder %v1785, 0.0
        %vm1828 = vcmp.ge.f32.partialorder %v1786, 0.0
        %vm1829 = vcmp.ge.f32.partialorder %v1787, 0.0
        %vm1830 = vcmp.ge.f32.partialorder %v1788, 0.0
        %vm1831 = vcmp.ge.f32.partialorder %v1789, 0.0
        %vm1832 = vcmp.ge.f32.partialorder %v1790, 0.0
        %vm1833 = vcmp.ge.f32.partialorder %v1791, 0.0
        %vm1834 = vcmp.ge.f32.partialorder %v1792, 0.0
        %v1835 = vsel %vm1827, %v239, 64
        %v1836 = vsel %vm1828, %v240, 64
        %v1837 = vsel %vm1829, %v241, 64
        %v1838 = vsel %vm1830, %v242, 64
        %v1839 = vsel %vm1831, %v243, 64
        %v1840 = vsel %vm1832, %v244, 64
        %v1841 = vsel %vm1833, %v245, 64
        %v1842 = vsel %vm1834, %v246, 64
        %vm1843 = vcmp.lt.s32.totalorder %v1835, %v1839
        %v1844 = vsel %vm1843, %v1835, %v1839
        %vm1845 = vcmp.lt.s32.totalorder %v1836, %v1840
        %v1846 = vsel %vm1845, %v1836, %v1840
        %vm1847 = vcmp.lt.s32.totalorder %v1837, %v1841
        %v1848 = vsel %vm1847, %v1837, %v1841
        %vm1849 = vcmp.lt.s32.totalorder %v1838, %v1842
        %v1850 = vsel %vm1849, %v1838, %v1842
        %vm1851 = vcmp.lt.s32.totalorder %v1844, %v1846
        %v1852 = vsel %vm1851, %v1844, %v1846
        %vm1853 = vcmp.lt.s32.totalorder %v1848, %v1850
        %v1854 = vsel %vm1853, %v1848, %v1850
        %vm1855 = vcmp.lt.s32.totalorder %v1852, %v1854
        %v1856 = vsel %vm1855, %v1852, %v1854
        %v1857 = vrot.slane %v1856, 4
        %vm1858 = vcmp.lt.s32.totalorder %v1856, %v1857
        %v1859 = vsel %vm1858, %v1856, %v1857
        %v1860 = vrot.slane %v1859, 2
        %vm1861 = vcmp.lt.s32.totalorder %v1859, %v1860
        %v1862 = vsel %vm1861, %v1859, %v1860
        %v1863 = vrot.slane %v1862, 1
        %vm1864 = vcmp.lt.s32.totalorder %v1862, %v1863
        %v1865 = vsel %vm1864, %v1862, %v1863
        %vm1866 = vcmp.gt.f32.partialorder %v1783, %v1585
        %v1867 = vadd.s32 %v1865, 448
        %v1868 = vsel %vm1866, %v1867, %v1669
        %v1869 = vsub.s32 %v237, 448
        %v1870 = vperm.slane %v1869, 0
        %vm1871 = vcmp.eq.s32.totalorder %v239, %v1870
        %vm1872 = vcmp.eq.s32.totalorder %v240, %v1870
        %vm1873 = vcmp.eq.s32.totalorder %v241, %v1870
        %vm1874 = vcmp.eq.s32.totalorder %v242, %v1870
        %vm1875 = vcmp.eq.s32.totalorder %v243, %v1870
        %vm1876 = vcmp.eq.s32.totalorder %v244, %v1870
        %vm1877 = vcmp.eq.s32.totalorder %v245, %v1870
        %vm1878 = vcmp.eq.s32.totalorder %v246, %v1870
        %v1879 = vsel %vm1871, %v1752, 0.0
        %v1880 = vsel %vm1872, %v1754, 0.0
        %v1881 = vsel %vm1873, %v1757, 0.0
        %v1882 = vsel %vm1874, %v1759, 0.0
        %v1883 = vsel %vm1875, %v1762, 0.0
        %v1884 = vsel %vm1876, %v1764, 0.0
        %v1885 = vsel %vm1877, %v1767, 0.0
        %v1886 = vsel %vm1878, %v1769, 0.0
        %v1887 = vadd.f32 %v1879, %v1880
        %v1888 = vadd.f32 %v1887, %v1881
        %v1889 = vadd.f32 %v1888, %v1882
        %v1890 = vadd.f32 %v1889, %v1883
        %v1891 = vadd.f32 %v1890, %v1884
        %v1892 = vadd.f32 %v1891, %v1885
        %v1893 = vadd.f32 %v1892, %v1886
        %v1894 = vrot.slane %v1893, 4
        %v1895 = vadd.f32 %v1893, %v1894
        %v1896 = vrot.slane %v1895, 2
        %v1897 = vadd.f32 %v1895, %v1896
        %v1898 = vrot.slane %v1897, 1
        %v1899 = vadd.f32 %v1897, %v1898
        %v1900 = vadd.f32 %v1701, %v1899
        %v1901 = vlog2.pop %v1826
        %v1902 = vmul.f32 %v1901, 0.6931472
        %v1903 = vadd.f32 %v1784, %v1902
        %v1904 = vsub.f32 %v1903, %v1900
        %1905 = vst [vmem:[%s205] sm:$0x1] %v1904
        %1906 = vst [vmem:[%s211] sm:$0x1] %v1868
        %s1907 = sand.u32 %s103, 1
        %s1908 = scalar_lea.sflag [#allocation3], %s1907
        %s1909 = sand.u32 %s103, 1
        %s1910 = scalar_lea.vmem [#allocation2], %s1909
        %s1911 = sand.u32 %s129, 1
        %s1912 = scalar_lea.sflag [#allocation5], %s1911
        %s1913 = sand.u32 %s129, 1
        %s1914 = scalar_lea.vmem [#allocation4], %s1913
        // Predicated region
        $region33: #{tpu_custom_call.1} parent=31 // pred_check
          %p1915 = pneg %p113
        $region34: #{tpu_custom_call.1} parent=31 // pred_check_branch
          %1917 = sbr.rel (%p1915) target = $region36
        $region35: #{tpu_custom_call.1} parent=31 // pred_region
          %1919 = vsyncadd %s1908, 0
          %s1920 = scalar_lea.hbm %s3, %s22
          %s1922 = sshll.u32 %s1910, 4
          %s1923 = int_to_ptr.vmem [resolvable:$true] %s1922
          %s1924 = sshll.u32 %s1920, 4
          %s1925 = int_to_ptr.hbm [resolvable:$true] %s1924
          %1927 = dma.vmem_to_hbm [thread:$0]  %s1923, 16, %s1925, %s1908
        $region36: #{tpu_custom_call.1} parent=31 // pred_fallthru
          _
        // Predicated region
        $region37: #{tpu_custom_call.1} parent=31 // pred_check
          %p1928 = pneg %p139
        $region38: #{tpu_custom_call.1} parent=31 // pred_check_branch
          %1930 = sbr.rel (%p1928) target = $region40
        $region39: #{tpu_custom_call.1} parent=31 // pred_region
          %1932 = vsyncadd %s1912, 0
          %s1933 = scalar_lea.hbm %s4, %s22
          %s1935 = sshll.u32 %s1914, 4
          %s1936 = int_to_ptr.vmem [resolvable:$true] %s1935
          %s1937 = sshll.u32 %s1933, 4
          %s1938 = int_to_ptr.hbm [resolvable:$true] %s1937
          %1940 = dma.vmem_to_hbm [thread:$0]  %s1936, 16, %s1938, %s1912
        $region40: #{tpu_custom_call.1} parent=31 // pred_fallthru
          _
      $region32: #{tpu_custom_call.1} parent=5 // pred_fallthru
        _
      %p1941 = scmp.le.s32.totalorder 2, %s17
      // Predicated region
      $region41: #{tpu_custom_call.1} parent=5 // pred_check
        %p1942 = pneg %p1941
      $region42: #{tpu_custom_call.1} parent=5 // pred_check_branch
        %1944 = sbr.rel (%p1942) target = $region44
      $region43: #{tpu_custom_call.1} parent=5 // pred_region
        %s1945 = ssub.s32 %s17, 2
        // Predicated region
        $region45: #{tpu_custom_call.1} parent=43 // pred_check
          %p1946 = pneg %p119
        $region46: #{tpu_custom_call.1} parent=43 // pred_check_branch
          %1948 = sbr.rel (%p1946) target = $region48
        $region47: #{tpu_custom_call.1} parent=43 // pred_region
          %s1949 = sand.u32 %s104, 1
          %s1950 = scalar_lea.sflag [#allocation3], %s1949
          %s1951 = sand.u32 %s104, 1
          %s1952 = scalar_lea.vmem [#allocation2], %s1951
          %1954 = dma.done %s1950, 16
        $region48: #{tpu_custom_call.1} parent=43 // pred_fallthru
          _
        // Predicated region
        $region49: #{tpu_custom_call.1} parent=43 // pred_check
          %p1955 = pneg %p145
        $region50: #{tpu_custom_call.1} parent=43 // pred_check_branch
          %1957 = sbr.rel (%p1955) target = $region52
        $region51: #{tpu_custom_call.1} parent=43 // pred_region
          %s1958 = sand.u32 %s130, 1
          %s1959 = scalar_lea.sflag [#allocation5], %s1958
          %s1960 = sand.u32 %s130, 1
          %s1961 = scalar_lea.vmem [#allocation4], %s1960
          %1963 = dma.done %s1959, 16
        $region52: #{tpu_custom_call.1} parent=43 // pred_fallthru
          _
      $region44: #{tpu_custom_call.1} parent=5 // pred_fallthru
        _
    $region6: #{tpu_custom_call.1} parent=1 // loop_footer
      %s21 = sadd.s32 1, %s17
    $region7: #{tpu_custom_call.1} parent=1 // loop_footer_branch
      %16 = sbr.rel target = $region3
    $region8: #{tpu_custom_call.1} parent=1 // loop_exit
      _
    %1964 = vsyncpa [#allocation3], 1
    %s1965 = scalar_lea.sflag [#allocation3], 1
    %1966 = vsyncpa %s1965, 1
    %1967 = vsyncpa [#allocation5], 1
    %s1968 = scalar_lea.sflag [#allocation5], 1
    %1969 = vsyncpa %s1968, 1

</llo_original>
